<compile_context>
chip_gen: v7x
topology: tpu7x:2x2x1
jax: 0.10.0
libtpu: 0.0.40
codegen_flags: <defaults>
</compile_context>

<pallas_src>
import functools
import math

import jax
import jax.numpy as jnp
from jax.experimental import pallas as pl
from jax.experimental.pallas import tpu as pltpu

INPUT_DIM = 2
ENCODE_DIM = 3
EXTEND_RATE = 2
HID = ENCODE_DIM ** 2            # 9
EXT = ENCODE_DIM * EXTEND_RATE   # 6
SHARPEN_T = 1.0                  # forward() calls sharpen(d_y, T=1.0)

LANES = 128
SUBLANES = 8

# ---- packed parameter layout: one flat f32 vector living in SMEM ----------
_PARAM_LAYOUT = (
    ("ew1", (INPUT_DIM, HID)), ("eb1", (HID,)),
    ("ew2", (HID, INPUT_DIM)), ("eb2", (INPUT_DIM,)),
    ("xw",  (INPUT_DIM, EXT)), ("xb",  (EXT,)),
    ("dw1", (EXT, HID)),       ("db1", (HID,)),
    ("dw2", (HID, INPUT_DIM)), ("db2", (INPUT_DIM,)),
)
_PARAM_SHAPES = dict(_PARAM_LAYOUT)
_PARAM_OFFSETS = {}
_off = 0
for _name, _shape in _PARAM_LAYOUT:
    _PARAM_OFFSETS[_name] = _off
    _off += math.prod(_shape)
N_PARAMS = _off                  # 148 scalars (< 1 KiB of SMEM)


def pack_params(params):
    """Flatten all weights/biases (weights stored (in, out)) into one f32 vector."""
    flat = [params[name].reshape(-1).astype(jnp.float32) for name, _ in _PARAM_LAYOUT]
    return jnp.concatenate(flat, axis=0)


# ---- kernel ----------------------------------------------------------------
def autoencoder_kernel(p_ref, x_ref, out_ref):
    """p_ref: SMEM (N_PARAMS,) f32.  x_ref: VMEM (2, R, 128).  out_ref: VMEM (4, R, 128)."""

    def w(name, i, j):           # weights stored (in, out), row-major
        return p_ref[_PARAM_OFFSETS[name] + i * _PARAM_SHAPES[name][1] + j]

    def b(name, j):
        return p_ref[_PARAM_OFFSETS[name] + j]

    x = [x_ref[0], x_ref[1]]     # two dense (R, 128) f32 slabs (batch on lanes)

    # encoder: Linear(2, 9) -> ReLU  (scalar-weight VPU FMAs, no MXU)
    h = []
    for j in range(HID):
        acc = x[0] * w("ew1", 0, j) + x[1] * w("ew1", 1, j) + b("eb1", j)
        h.append(jnp.maximum(acc, 0.0))

    # encoder: Linear(9, 2)
    z = []
    for j in range(INPUT_DIM):
        acc = h[0] * w("ew2", 0, j)
        for k in range(1, HID):
            acc = acc + h[k] * w("ew2", k, j)
        z.append(acc + b("eb2", j))

    # softmax over the 2 classes (dim=1): sigmoid(z0 - z1) -> no XLU reductions
    p0 = 1.0 / (1.0 + jnp.exp(z[1] - z[0]))
    p1 = 1.0 / (1.0 + jnp.exp(z[0] - z[1]))

    # sharpen(p, T): identity for T == 1.0 (specialized away at trace time)
    if SHARPEN_T != 1.0:
        inv_t = 1.0 / SHARPEN_T
        q0 = jnp.exp(jnp.log(p0) * inv_t)
        q1 = jnp.exp(jnp.log(p1) * inv_t)
        norm = 1.0 / (q0 + q1)
        p0 = q0 * norm
        p1 = q1 * norm
    d_y = [p0, p1]

    # extension: Linear(2, 6)
    e = []
    for j in range(EXT):
        e.append(d_y[0] * w("xw", 0, j) + d_y[1] * w("xw", 1, j) + b("xb", j))

    # decoder: Linear(6, 9) -> ReLU
    h2 = []
    for j in range(HID):
        acc = e[0] * w("dw1", 0, j)
        for k in range(1, EXT):
            acc = acc + e[k] * w("dw1", k, j)
        h2.append(jnp.maximum(acc + b("db1", j), 0.0))

    # decoder: Linear(9, 2)
    o = []
    for j in range(INPUT_DIM):
        acc = h2[0] * w("dw2", 0, j)
        for k in range(1, HID):
            acc = acc + h2[k] * w("dw2", k, j)
        o.append(acc + b("db2", j))

    # final Softmax(dim=1) over 2 classes
    r0 = 1.0 / (1.0 + jnp.exp(o[1] - o[0]))
    r1 = 1.0 / (1.0 + jnp.exp(o[0] - o[1]))

    # fused lane-dense output slab: rows 0..1 = reconstruction, rows 2..3 = d_y
    out_ref[0] = r0
    out_ref[1] = r1
    out_ref[2] = p0
    out_ref[3] = p1


# ---- wrapper ----------------------------------------------------------------
@functools.partial(jax.jit, static_argnames=("tile_rows",))
def autoencoder_extend_forward(x, packed_params, tile_rows=2048):
    """Returns (reconstruction, d_y), both shaped (N, INPUT_DIM), N = x.size // INPUT_DIM."""
    assert tile_rows % (SUBLANES * LANES) == 0, "tile_rows must be a multiple of 1024"
    x2 = x.reshape(-1, INPUT_DIM).astype(jnp.float32)      # x.view(-1, d)
    n = x2.shape[0]

    # Even grid of >= 2 steps so both v7x TensorCores get work; pad batch with zeros.
    g = pl.cdiv(n, tile_rows)
    g = max(g + (g % 2), 2)
    n_pad = g * tile_rows
    r = tile_rows // LANES

    # Batch on lanes: (N, 2) -> (2, n_pad) -> (2, n_pad/128, 128)
    xt = jnp.pad(x2.T, ((0, 0), (0, n_pad - n)))
    xt = xt.reshape(INPUT_DIM, n_pad // LANES, LANES)

    out = pl.pallas_call(
        autoencoder_kernel,
        grid=(g,),
        in_specs=[
            pl.BlockSpec(memory_space=pltpu.MemorySpace.SMEM),          # packed params
            pl.BlockSpec((INPUT_DIM, r, LANES), lambda i: (0, i, 0)),   # x tile
        ],
        out_specs=pl.BlockSpec((2 * INPUT_DIM, r, LANES), lambda i: (0, i, 0)),
        out_shape=jax.ShapeDtypeStruct((2 * INPUT_DIM, n_pad // LANES, LANES),
                                       jnp.float32),
        compiler_params=pltpu.CompilerParams(dimension_semantics=("parallel",)),
    )(packed_params, xt)

    out = out.reshape(2 * INPUT_DIM, n_pad)[:, :n]   # drop padded rows
    recon = out[:INPUT_DIM].T                        # (N, 2)
    d_y = out[INPUT_DIM:].T                          # (N, 2)
    return recon, d_y


# ---- parameters / reference -------------------------------------------------
def init_params(key):
    """nn.Linear params after initialize_weights: W ~ N(0, 0.01), b = 0.
       Stored as (in, out), i.e. the transpose of torch's (out, in)."""
    ks = jax.random.split(key, 5)

    def w(k, shape):
        return 0.01 * jax.random.normal(k, shape, dtype=jnp.float32)

    return dict(
        ew1=w(ks[0], (INPUT_DIM, HID)), eb1=jnp.zeros((HID,), jnp.float32),
        ew2=w(ks[1], (HID, INPUT_DIM)), eb2=jnp.zeros((INPUT_DIM,), jnp.float32),
        xw=w(ks[2], (INPUT_DIM, EXT)),  xb=jnp.zeros((EXT,), jnp.float32),
        dw1=w(ks[3], (EXT, HID)),       db1=jnp.zeros((HID,), jnp.float32),
        dw2=w(ks[4], (HID, INPUT_DIM)), db2=jnp.zeros((INPUT_DIM,), jnp.float32),
    )


def reference_forward(x, params):
    """Pure-JAX reference of AutoEncoder_extend.forward."""
    p = params
    x2 = x.reshape(-1, INPUT_DIM).astype(jnp.float32)
    h = jax.nn.relu(x2 @ p["ew1"] + p["eb1"])
    z = h @ p["ew2"] + p["eb2"]
    d_y = jax.nn.softmax(z, axis=1)
    if SHARPEN_T != 1.0:
        pt = d_y ** (1.0 / SHARPEN_T)
        d_y = pt / jnp.sum(pt, axis=1, keepdims=True)
    ex = d_y @ p["xw"] + p["xb"]
    h2 = jax.nn.relu(ex @ p["dw1"] + p["db1"])
    o = jax.nn.softmax(h2 @ p["dw2"] + p["db2"], axis=1)
    return o, d_y


if __name__ == "__main__":
    key = jax.random.PRNGKey(0)
    k_x, k_p = jax.random.split(key)

    # small input consistent with x.view(-1, input_dim=2)
    x = jax.random.normal(k_x, (128, INPUT_DIM), dtype=jnp.float32)
    params = init_params(k_p)
    packed = pack_params(params)

    recon, d_y = autoencoder_extend_forward(x, packed)
    recon = jax.block_until_ready(recon)
    d_y = jax.block_until_ready(d_y)

    r_ref, dy_ref = reference_forward(x, params)
    assert recon.shape == r_ref.shape and d_y.shape == dy_ref.shape
    assert jnp.allclose(recon, r_ref, atol=1e-5, rtol=1e-5)
    assert jnp.allclose(d_y, dy_ref, atol=1e-5, rtol=1e-5)

    print("KERNEL_OK")
</pallas_src>

<mosaic_0001>
module attributes {stable_mosaic.version = 11 : i64} {
  func.func @autoencoder_kernel(%arg0: i32, %arg1: memref<148xf32, #tpu.memory_space<smem>>, %arg2: memref<2x16x128xf32, #tpu.memory_space<vmem>>, %arg3: memref<4x16x128xf32, #tpu.memory_space<vmem>>) attributes {dimension_semantics = [#tpu.dimension_semantics<parallel>], iteration_bounds = array<i64: 2>, scalar_prefetch = 0 : i64, scratch_operands = 0 : i64, tpu.core_type = #tpu.core_type<tc>, window_params = [{transform_indices = @transform_0, window_bounds = array<i64: 148>}, {transform_indices = @transform_1, window_bounds = array<i64: 2, 16, 128>}, {transform_indices = @transform_2, window_bounds = array<i64: 4, 16, 128>}]} {
    %c0 = arith.constant 0 : index
    %c0_0 = arith.constant 0 : index
    %c0_1 = arith.constant 0 : index
    %0 = vector.load %arg2[%c0, %c0_0, %c0_1] : memref<2x16x128xf32, #tpu.memory_space<vmem>>, vector<1x16x128xf32>
    %1 = vector.shape_cast %0 : vector<1x16x128xf32> to vector<16x128xf32>
    %c1 = arith.constant 1 : index
    %c0_2 = arith.constant 0 : index
    %c0_3 = arith.constant 0 : index
    %2 = vector.load %arg2[%c1, %c0_2, %c0_3] : memref<2x16x128xf32, #tpu.memory_space<vmem>>, vector<1x16x128xf32>
    %3 = vector.shape_cast %2 : vector<1x16x128xf32> to vector<16x128xf32>
    %c0_4 = arith.constant 0 : index
    %4 = memref.load %arg1[%c0_4] : memref<148xf32, #tpu.memory_space<smem>>
    %5 = vector.broadcast %4 : f32 to vector<16x128xf32>
    %6 = arith.mulf %1, %5 : vector<16x128xf32>
    %c9 = arith.constant 9 : index
    %7 = memref.load %arg1[%c9] : memref<148xf32, #tpu.memory_space<smem>>
    %8 = vector.broadcast %7 : f32 to vector<16x128xf32>
    %9 = arith.mulf %3, %8 : vector<16x128xf32>
    %10 = arith.addf %6, %9 : vector<16x128xf32>
    %c18 = arith.constant 18 : index
    %11 = memref.load %arg1[%c18] : memref<148xf32, #tpu.memory_space<smem>>
    %12 = vector.broadcast %11 : f32 to vector<16x128xf32>
    %13 = arith.addf %10, %12 : vector<16x128xf32>
    %cst = arith.constant 0.000000e+00 : f32
    %14 = vector.broadcast %cst : f32 to vector<16x128xf32>
    %15 = arith.maximumf %13, %14 : vector<16x128xf32>
    %c1_5 = arith.constant 1 : index
    %16 = memref.load %arg1[%c1_5] : memref<148xf32, #tpu.memory_space<smem>>
    %17 = vector.broadcast %16 : f32 to vector<16x128xf32>
    %18 = arith.mulf %1, %17 : vector<16x128xf32>
    %c10 = arith.constant 10 : index
    %19 = memref.load %arg1[%c10] : memref<148xf32, #tpu.memory_space<smem>>
    %20 = vector.broadcast %19 : f32 to vector<16x128xf32>
    %21 = arith.mulf %3, %20 : vector<16x128xf32>
    %22 = arith.addf %18, %21 : vector<16x128xf32>
    %c19 = arith.constant 19 : index
    %23 = memref.load %arg1[%c19] : memref<148xf32, #tpu.memory_space<smem>>
    %24 = vector.broadcast %23 : f32 to vector<16x128xf32>
    %25 = arith.addf %22, %24 : vector<16x128xf32>
    %cst_6 = arith.constant 0.000000e+00 : f32
    %26 = vector.broadcast %cst_6 : f32 to vector<16x128xf32>
    %27 = arith.maximumf %25, %26 : vector<16x128xf32>
    %c2 = arith.constant 2 : index
    %28 = memref.load %arg1[%c2] : memref<148xf32, #tpu.memory_space<smem>>
    %29 = vector.broadcast %28 : f32 to vector<16x128xf32>
    %30 = arith.mulf %1, %29 : vector<16x128xf32>
    %c11 = arith.constant 11 : index
    %31 = memref.load %arg1[%c11] : memref<148xf32, #tpu.memory_space<smem>>
    %32 = vector.broadcast %31 : f32 to vector<16x128xf32>
    %33 = arith.mulf %3, %32 : vector<16x128xf32>
    %34 = arith.addf %30, %33 : vector<16x128xf32>
    %c20 = arith.constant 20 : index
    %35 = memref.load %arg1[%c20] : memref<148xf32, #tpu.memory_space<smem>>
    %36 = vector.broadcast %35 : f32 to vector<16x128xf32>
    %37 = arith.addf %34, %36 : vector<16x128xf32>
    %cst_7 = arith.constant 0.000000e+00 : f32
    %38 = vector.broadcast %cst_7 : f32 to vector<16x128xf32>
    %39 = arith.maximumf %37, %38 : vector<16x128xf32>
    %c3 = arith.constant 3 : index
    %40 = memref.load %arg1[%c3] : memref<148xf32, #tpu.memory_space<smem>>
    %41 = vector.broadcast %40 : f32 to vector<16x128xf32>
    %42 = arith.mulf %1, %41 : vector<16x128xf32>
    %c12 = arith.constant 12 : index
    %43 = memref.load %arg1[%c12] : memref<148xf32, #tpu.memory_space<smem>>
    %44 = vector.broadcast %43 : f32 to vector<16x128xf32>
    %45 = arith.mulf %3, %44 : vector<16x128xf32>
    %46 = arith.addf %42, %45 : vector<16x128xf32>
    %c21 = arith.constant 21 : index
    %47 = memref.load %arg1[%c21] : memref<148xf32, #tpu.memory_space<smem>>
    %48 = vector.broadcast %47 : f32 to vector<16x128xf32>
    %49 = arith.addf %46, %48 : vector<16x128xf32>
    %cst_8 = arith.constant 0.000000e+00 : f32
    %50 = vector.broadcast %cst_8 : f32 to vector<16x128xf32>
    %51 = arith.maximumf %49, %50 : vector<16x128xf32>
    %c4 = arith.constant 4 : index
    %52 = memref.load %arg1[%c4] : memref<148xf32, #tpu.memory_space<smem>>
    %53 = vector.broadcast %52 : f32 to vector<16x128xf32>
    %54 = arith.mulf %1, %53 : vector<16x128xf32>
    %c13 = arith.constant 13 : index
    %55 = memref.load %arg1[%c13] : memref<148xf32, #tpu.memory_space<smem>>
    %56 = vector.broadcast %55 : f32 to vector<16x128xf32>
    %57 = arith.mulf %3, %56 : vector<16x128xf32>
    %58 = arith.addf %54, %57 : vector<16x128xf32>
    %c22 = arith.constant 22 : index
    %59 = memref.load %arg1[%c22] : memref<148xf32, #tpu.memory_space<smem>>
    %60 = vector.broadcast %59 : f32 to vector<16x128xf32>
    %61 = arith.addf %58, %60 : vector<16x128xf32>
    %cst_9 = arith.constant 0.000000e+00 : f32
    %62 = vector.broadcast %cst_9 : f32 to vector<16x128xf32>
    %63 = arith.maximumf %61, %62 : vector<16x128xf32>
    %c5 = arith.constant 5 : index
    %64 = memref.load %arg1[%c5] : memref<148xf32, #tpu.memory_space<smem>>
    %65 = vector.broadcast %64 : f32 to vector<16x128xf32>
    %66 = arith.mulf %1, %65 : vector<16x128xf32>
    %c14 = arith.constant 14 : index
    %67 = memref.load %arg1[%c14] : memref<148xf32, #tpu.memory_space<smem>>
    %68 = vector.broadcast %67 : f32 to vector<16x128xf32>
    %69 = arith.mulf %3, %68 : vector<16x128xf32>
    %70 = arith.addf %66, %69 : vector<16x128xf32>
    %c23 = arith.constant 23 : index
    %71 = memref.load %arg1[%c23] : memref<148xf32, #tpu.memory_space<smem>>
    %72 = vector.broadcast %71 : f32 to vector<16x128xf32>
    %73 = arith.addf %70, %72 : vector<16x128xf32>
    %cst_10 = arith.constant 0.000000e+00 : f32
    %74 = vector.broadcast %cst_10 : f32 to vector<16x128xf32>
    %75 = arith.maximumf %73, %74 : vector<16x128xf32>
    %c6 = arith.constant 6 : index
    %76 = memref.load %arg1[%c6] : memref<148xf32, #tpu.memory_space<smem>>
    %77 = vector.broadcast %76 : f32 to vector<16x128xf32>
    %78 = arith.mulf %1, %77 : vector<16x128xf32>
    %c15 = arith.constant 15 : index
    %79 = memref.load %arg1[%c15] : memref<148xf32, #tpu.memory_space<smem>>
    %80 = vector.broadcast %79 : f32 to vector<16x128xf32>
    %81 = arith.mulf %3, %80 : vector<16x128xf32>
    %82 = arith.addf %78, %81 : vector<16x128xf32>
    %c24 = arith.constant 24 : index
    %83 = memref.load %arg1[%c24] : memref<148xf32, #tpu.memory_space<smem>>
    %84 = vector.broadcast %83 : f32 to vector<16x128xf32>
    %85 = arith.addf %82, %84 : vector<16x128xf32>
    %cst_11 = arith.constant 0.000000e+00 : f32
    %86 = vector.broadcast %cst_11 : f32 to vector<16x128xf32>
    %87 = arith.maximumf %85, %86 : vector<16x128xf32>
    %c7 = arith.constant 7 : index
    %88 = memref.load %arg1[%c7] : memref<148xf32, #tpu.memory_space<smem>>
    %89 = vector.broadcast %88 : f32 to vector<16x128xf32>
    %90 = arith.mulf %1, %89 : vector<16x128xf32>
    %c16 = arith.constant 16 : index
    %91 = memref.load %arg1[%c16] : memref<148xf32, #tpu.memory_space<smem>>
    %92 = vector.broadcast %91 : f32 to vector<16x128xf32>
    %93 = arith.mulf %3, %92 : vector<16x128xf32>
    %94 = arith.addf %90, %93 : vector<16x128xf32>
    %c25 = arith.constant 25 : index
    %95 = memref.load %arg1[%c25] : memref<148xf32, #tpu.memory_space<smem>>
    %96 = vector.broadcast %95 : f32 to vector<16x128xf32>
    %97 = arith.addf %94, %96 : vector<16x128xf32>
    %cst_12 = arith.constant 0.000000e+00 : f32
    %98 = vector.broadcast %cst_12 : f32 to vector<16x128xf32>
    %99 = arith.maximumf %97, %98 : vector<16x128xf32>
    %c8 = arith.constant 8 : index
    %100 = memref.load %arg1[%c8] : memref<148xf32, #tpu.memory_space<smem>>
    %101 = vector.broadcast %100 : f32 to vector<16x128xf32>
    %102 = arith.mulf %1, %101 : vector<16x128xf32>
    %c17 = arith.constant 17 : index
    %103 = memref.load %arg1[%c17] : memref<148xf32, #tpu.memory_space<smem>>
    %104 = vector.broadcast %103 : f32 to vector<16x128xf32>
    %105 = arith.mulf %3, %104 : vector<16x128xf32>
    %106 = arith.addf %102, %105 : vector<16x128xf32>
    %c26 = arith.constant 26 : index
    %107 = memref.load %arg1[%c26] : memref<148xf32, #tpu.memory_space<smem>>
    %108 = vector.broadcast %107 : f32 to vector<16x128xf32>
    %109 = arith.addf %106, %108 : vector<16x128xf32>
    %cst_13 = arith.constant 0.000000e+00 : f32
    %110 = vector.broadcast %cst_13 : f32 to vector<16x128xf32>
    %111 = arith.maximumf %109, %110 : vector<16x128xf32>
    %c27 = arith.constant 27 : index
    %112 = memref.load %arg1[%c27] : memref<148xf32, #tpu.memory_space<smem>>
    %113 = vector.broadcast %112 : f32 to vector<16x128xf32>
    %114 = arith.mulf %15, %113 : vector<16x128xf32>
    %c29 = arith.constant 29 : index
    %115 = memref.load %arg1[%c29] : memref<148xf32, #tpu.memory_space<smem>>
    %116 = vector.broadcast %115 : f32 to vector<16x128xf32>
    %117 = arith.mulf %27, %116 : vector<16x128xf32>
    %118 = arith.addf %114, %117 : vector<16x128xf32>
    %c31 = arith.constant 31 : index
    %119 = memref.load %arg1[%c31] : memref<148xf32, #tpu.memory_space<smem>>
    %120 = vector.broadcast %119 : f32 to vector<16x128xf32>
    %121 = arith.mulf %39, %120 : vector<16x128xf32>
    %122 = arith.addf %118, %121 : vector<16x128xf32>
    %c33 = arith.constant 33 : index
    %123 = memref.load %arg1[%c33] : memref<148xf32, #tpu.memory_space<smem>>
    %124 = vector.broadcast %123 : f32 to vector<16x128xf32>
    %125 = arith.mulf %51, %124 : vector<16x128xf32>
    %126 = arith.addf %122, %125 : vector<16x128xf32>
    %c35 = arith.constant 35 : index
    %127 = memref.load %arg1[%c35] : memref<148xf32, #tpu.memory_space<smem>>
    %128 = vector.broadcast %127 : f32 to vector<16x128xf32>
    %129 = arith.mulf %63, %128 : vector<16x128xf32>
    %130 = arith.addf %126, %129 : vector<16x128xf32>
    %c37 = arith.constant 37 : index
    %131 = memref.load %arg1[%c37] : memref<148xf32, #tpu.memory_space<smem>>
    %132 = vector.broadcast %131 : f32 to vector<16x128xf32>
    %133 = arith.mulf %75, %132 : vector<16x128xf32>
    %134 = arith.addf %130, %133 : vector<16x128xf32>
    %c39 = arith.constant 39 : index
    %135 = memref.load %arg1[%c39] : memref<148xf32, #tpu.memory_space<smem>>
    %136 = vector.broadcast %135 : f32 to vector<16x128xf32>
    %137 = arith.mulf %87, %136 : vector<16x128xf32>
    %138 = arith.addf %134, %137 : vector<16x128xf32>
    %c41 = arith.constant 41 : index
    %139 = memref.load %arg1[%c41] : memref<148xf32, #tpu.memory_space<smem>>
    %140 = vector.broadcast %139 : f32 to vector<16x128xf32>
    %141 = arith.mulf %99, %140 : vector<16x128xf32>
    %142 = arith.addf %138, %141 : vector<16x128xf32>
    %c43 = arith.constant 43 : index
    %143 = memref.load %arg1[%c43] : memref<148xf32, #tpu.memory_space<smem>>
    %144 = vector.broadcast %143 : f32 to vector<16x128xf32>
    %145 = arith.mulf %111, %144 : vector<16x128xf32>
    %146 = arith.addf %142, %145 : vector<16x128xf32>
    %c45 = arith.constant 45 : index
    %147 = memref.load %arg1[%c45] : memref<148xf32, #tpu.memory_space<smem>>
    %148 = vector.broadcast %147 : f32 to vector<16x128xf32>
    %149 = arith.addf %146, %148 : vector<16x128xf32>
    %c28 = arith.constant 28 : index
    %150 = memref.load %arg1[%c28] : memref<148xf32, #tpu.memory_space<smem>>
    %151 = vector.broadcast %150 : f32 to vector<16x128xf32>
    %152 = arith.mulf %15, %151 : vector<16x128xf32>
    %c30 = arith.constant 30 : index
    %153 = memref.load %arg1[%c30] : memref<148xf32, #tpu.memory_space<smem>>
    %154 = vector.broadcast %153 : f32 to vector<16x128xf32>
    %155 = arith.mulf %27, %154 : vector<16x128xf32>
    %156 = arith.addf %152, %155 : vector<16x128xf32>
    %c32 = arith.constant 32 : index
    %157 = memref.load %arg1[%c32] : memref<148xf32, #tpu.memory_space<smem>>
    %158 = vector.broadcast %157 : f32 to vector<16x128xf32>
    %159 = arith.mulf %39, %158 : vector<16x128xf32>
    %160 = arith.addf %156, %159 : vector<16x128xf32>
    %c34 = arith.constant 34 : index
    %161 = memref.load %arg1[%c34] : memref<148xf32, #tpu.memory_space<smem>>
    %162 = vector.broadcast %161 : f32 to vector<16x128xf32>
    %163 = arith.mulf %51, %162 : vector<16x128xf32>
    %164 = arith.addf %160, %163 : vector<16x128xf32>
    %c36 = arith.constant 36 : index
    %165 = memref.load %arg1[%c36] : memref<148xf32, #tpu.memory_space<smem>>
    %166 = vector.broadcast %165 : f32 to vector<16x128xf32>
    %167 = arith.mulf %63, %166 : vector<16x128xf32>
    %168 = arith.addf %164, %167 : vector<16x128xf32>
    %c38 = arith.constant 38 : index
    %169 = memref.load %arg1[%c38] : memref<148xf32, #tpu.memory_space<smem>>
    %170 = vector.broadcast %169 : f32 to vector<16x128xf32>
    %171 = arith.mulf %75, %170 : vector<16x128xf32>
    %172 = arith.addf %168, %171 : vector<16x128xf32>
    %c40 = arith.constant 40 : index
    %173 = memref.load %arg1[%c40] : memref<148xf32, #tpu.memory_space<smem>>
    %174 = vector.broadcast %173 : f32 to vector<16x128xf32>
    %175 = arith.mulf %87, %174 : vector<16x128xf32>
    %176 = arith.addf %172, %175 : vector<16x128xf32>
    %c42 = arith.constant 42 : index
    %177 = memref.load %arg1[%c42] : memref<148xf32, #tpu.memory_space<smem>>
    %178 = vector.broadcast %177 : f32 to vector<16x128xf32>
    %179 = arith.mulf %99, %178 : vector<16x128xf32>
    %180 = arith.addf %176, %179 : vector<16x128xf32>
    %c44 = arith.constant 44 : index
    %181 = memref.load %arg1[%c44] : memref<148xf32, #tpu.memory_space<smem>>
    %182 = vector.broadcast %181 : f32 to vector<16x128xf32>
    %183 = arith.mulf %111, %182 : vector<16x128xf32>
    %184 = arith.addf %180, %183 : vector<16x128xf32>
    %c46 = arith.constant 46 : index
    %185 = memref.load %arg1[%c46] : memref<148xf32, #tpu.memory_space<smem>>
    %186 = vector.broadcast %185 : f32 to vector<16x128xf32>
    %187 = arith.addf %184, %186 : vector<16x128xf32>
    %188 = arith.subf %187, %149 : vector<16x128xf32>
    %189 = math.exp %188 : vector<16x128xf32>
    %cst_14 = arith.constant 1.000000e+00 : f32
    %190 = vector.broadcast %cst_14 : f32 to vector<16x128xf32>
    %191 = arith.addf %190, %189 : vector<16x128xf32>
    %cst_15 = arith.constant 1.000000e+00 : f32
    %192 = vector.broadcast %cst_15 : f32 to vector<16x128xf32>
    %193 = arith.divf %192, %191 : vector<16x128xf32>
    %194 = arith.subf %149, %187 : vector<16x128xf32>
    %195 = math.exp %194 : vector<16x128xf32>
    %cst_16 = arith.constant 1.000000e+00 : f32
    %196 = vector.broadcast %cst_16 : f32 to vector<16x128xf32>
    %197 = arith.addf %196, %195 : vector<16x128xf32>
    %cst_17 = arith.constant 1.000000e+00 : f32
    %198 = vector.broadcast %cst_17 : f32 to vector<16x128xf32>
    %199 = arith.divf %198, %197 : vector<16x128xf32>
    %c47 = arith.constant 47 : index
    %200 = memref.load %arg1[%c47] : memref<148xf32, #tpu.memory_space<smem>>
    %201 = vector.broadcast %200 : f32 to vector<16x128xf32>
    %202 = arith.mulf %193, %201 : vector<16x128xf32>
    %c53 = arith.constant 53 : index
    %203 = memref.load %arg1[%c53] : memref<148xf32, #tpu.memory_space<smem>>
    %204 = vector.broadcast %203 : f32 to vector<16x128xf32>
    %205 = arith.mulf %199, %204 : vector<16x128xf32>
    %206 = arith.addf %202, %205 : vector<16x128xf32>
    %c59 = arith.constant 59 : index
    %207 = memref.load %arg1[%c59] : memref<148xf32, #tpu.memory_space<smem>>
    %208 = vector.broadcast %207 : f32 to vector<16x128xf32>
    %209 = arith.addf %206, %208 : vector<16x128xf32>
    %c48 = arith.constant 48 : index
    %210 = memref.load %arg1[%c48] : memref<148xf32, #tpu.memory_space<smem>>
    %211 = vector.broadcast %210 : f32 to vector<16x128xf32>
    %212 = arith.mulf %193, %211 : vector<16x128xf32>
    %c54 = arith.constant 54 : index
    %213 = memref.load %arg1[%c54] : memref<148xf32, #tpu.memory_space<smem>>
    %214 = vector.broadcast %213 : f32 to vector<16x128xf32>
    %215 = arith.mulf %199, %214 : vector<16x128xf32>
    %216 = arith.addf %212, %215 : vector<16x128xf32>
    %c60 = arith.constant 60 : index
    %217 = memref.load %arg1[%c60] : memref<148xf32, #tpu.memory_space<smem>>
    %218 = vector.broadcast %217 : f32 to vector<16x128xf32>
    %219 = arith.addf %216, %218 : vector<16x128xf32>
    %c49 = arith.constant 49 : index
    %220 = memref.load %arg1[%c49] : memref<148xf32, #tpu.memory_space<smem>>
    %221 = vector.broadcast %220 : f32 to vector<16x128xf32>
    %222 = arith.mulf %193, %221 : vector<16x128xf32>
    %c55 = arith.constant 55 : index
    %223 = memref.load %arg1[%c55] : memref<148xf32, #tpu.memory_space<smem>>
    %224 = vector.broadcast %223 : f32 to vector<16x128xf32>
    %225 = arith.mulf %199, %224 : vector<16x128xf32>
    %226 = arith.addf %222, %225 : vector<16x128xf32>
    %c61 = arith.constant 61 : index
    %227 = memref.load %arg1[%c61] : memref<148xf32, #tpu.memory_space<smem>>
    %228 = vector.broadcast %227 : f32 to vector<16x128xf32>
    %229 = arith.addf %226, %228 : vector<16x128xf32>
    %c50 = arith.constant 50 : index
    %230 = memref.load %arg1[%c50] : memref<148xf32, #tpu.memory_space<smem>>
    %231 = vector.broadcast %230 : f32 to vector<16x128xf32>
    %232 = arith.mulf %193, %231 : vector<16x128xf32>
    %c56 = arith.constant 56 : index
    %233 = memref.load %arg1[%c56] : memref<148xf32, #tpu.memory_space<smem>>
    %234 = vector.broadcast %233 : f32 to vector<16x128xf32>
    %235 = arith.mulf %199, %234 : vector<16x128xf32>
    %236 = arith.addf %232, %235 : vector<16x128xf32>
    %c62 = arith.constant 62 : index
    %237 = memref.load %arg1[%c62] : memref<148xf32, #tpu.memory_space<smem>>
    %238 = vector.broadcast %237 : f32 to vector<16x128xf32>
    %239 = arith.addf %236, %238 : vector<16x128xf32>
    %c51 = arith.constant 51 : index
    %240 = memref.load %arg1[%c51] : memref<148xf32, #tpu.memory_space<smem>>
    %241 = vector.broadcast %240 : f32 to vector<16x128xf32>
    %242 = arith.mulf %193, %241 : vector<16x128xf32>
    %c57 = arith.constant 57 : index
    %243 = memref.load %arg1[%c57] : memref<148xf32, #tpu.memory_space<smem>>
    %244 = vector.broadcast %243 : f32 to vector<16x128xf32>
    %245 = arith.mulf %199, %244 : vector<16x128xf32>
    %246 = arith.addf %242, %245 : vector<16x128xf32>
    %c63 = arith.constant 63 : index
    %247 = memref.load %arg1[%c63] : memref<148xf32, #tpu.memory_space<smem>>
    %248 = vector.broadcast %247 : f32 to vector<16x128xf32>
    %249 = arith.addf %246, %248 : vector<16x128xf32>
    %c52 = arith.constant 52 : index
    %250 = memref.load %arg1[%c52] : memref<148xf32, #tpu.memory_space<smem>>
    %251 = vector.broadcast %250 : f32 to vector<16x128xf32>
    %252 = arith.mulf %193, %251 : vector<16x128xf32>
    %c58 = arith.constant 58 : index
    %253 = memref.load %arg1[%c58] : memref<148xf32, #tpu.memory_space<smem>>
    %254 = vector.broadcast %253 : f32 to vector<16x128xf32>
    %255 = arith.mulf %199, %254 : vector<16x128xf32>
    %256 = arith.addf %252, %255 : vector<16x128xf32>
    %c64 = arith.constant 64 : index
    %257 = memref.load %arg1[%c64] : memref<148xf32, #tpu.memory_space<smem>>
    %258 = vector.broadcast %257 : f32 to vector<16x128xf32>
    %259 = arith.addf %256, %258 : vector<16x128xf32>
    %c65 = arith.constant 65 : index
    %260 = memref.load %arg1[%c65] : memref<148xf32, #tpu.memory_space<smem>>
    %261 = vector.broadcast %260 : f32 to vector<16x128xf32>
    %262 = arith.mulf %209, %261 : vector<16x128xf32>
    %c74 = arith.constant 74 : index
    %263 = memref.load %arg1[%c74] : memref<148xf32, #tpu.memory_space<smem>>
    %264 = vector.broadcast %263 : f32 to vector<16x128xf32>
    %265 = arith.mulf %219, %264 : vector<16x128xf32>
    %266 = arith.addf %262, %265 : vector<16x128xf32>
    %c83 = arith.constant 83 : index
    %267 = memref.load %arg1[%c83] : memref<148xf32, #tpu.memory_space<smem>>
    %268 = vector.broadcast %267 : f32 to vector<16x128xf32>
    %269 = arith.mulf %229, %268 : vector<16x128xf32>
    %270 = arith.addf %266, %269 : vector<16x128xf32>
    %c92 = arith.constant 92 : index
    %271 = memref.load %arg1[%c92] : memref<148xf32, #tpu.memory_space<smem>>
    %272 = vector.broadcast %271 : f32 to vector<16x128xf32>
    %273 = arith.mulf %239, %272 : vector<16x128xf32>
    %274 = arith.addf %270, %273 : vector<16x128xf32>
    %c101 = arith.constant 101 : index
    %275 = memref.load %arg1[%c101] : memref<148xf32, #tpu.memory_space<smem>>
    %276 = vector.broadcast %275 : f32 to vector<16x128xf32>
    %277 = arith.mulf %249, %276 : vector<16x128xf32>
    %278 = arith.addf %274, %277 : vector<16x128xf32>
    %c110 = arith.constant 110 : index
    %279 = memref.load %arg1[%c110] : memref<148xf32, #tpu.memory_space<smem>>
    %280 = vector.broadcast %279 : f32 to vector<16x128xf32>
    %281 = arith.mulf %259, %280 : vector<16x128xf32>
    %282 = arith.addf %278, %281 : vector<16x128xf32>
    %c119 = arith.constant 119 : index
    %283 = memref.load %arg1[%c119] : memref<148xf32, #tpu.memory_space<smem>>
    %284 = vector.broadcast %283 : f32 to vector<16x128xf32>
    %285 = arith.addf %282, %284 : vector<16x128xf32>
    %cst_18 = arith.constant 0.000000e+00 : f32
    %286 = vector.broadcast %cst_18 : f32 to vector<16x128xf32>
    %287 = arith.maximumf %285, %286 : vector<16x128xf32>
    %c66 = arith.constant 66 : index
    %288 = memref.load %arg1[%c66] : memref<148xf32, #tpu.memory_space<smem>>
    %289 = vector.broadcast %288 : f32 to vector<16x128xf32>
    %290 = arith.mulf %209, %289 : vector<16x128xf32>
    %c75 = arith.constant 75 : index
    %291 = memref.load %arg1[%c75] : memref<148xf32, #tpu.memory_space<smem>>
    %292 = vector.broadcast %291 : f32 to vector<16x128xf32>
    %293 = arith.mulf %219, %292 : vector<16x128xf32>
    %294 = arith.addf %290, %293 : vector<16x128xf32>
    %c84 = arith.constant 84 : index
    %295 = memref.load %arg1[%c84] : memref<148xf32, #tpu.memory_space<smem>>
    %296 = vector.broadcast %295 : f32 to vector<16x128xf32>
    %297 = arith.mulf %229, %296 : vector<16x128xf32>
    %298 = arith.addf %294, %297 : vector<16x128xf32>
    %c93 = arith.constant 93 : index
    %299 = memref.load %arg1[%c93] : memref<148xf32, #tpu.memory_space<smem>>
    %300 = vector.broadcast %299 : f32 to vector<16x128xf32>
    %301 = arith.mulf %239, %300 : vector<16x128xf32>
    %302 = arith.addf %298, %301 : vector<16x128xf32>
    %c102 = arith.constant 102 : index
    %303 = memref.load %arg1[%c102] : memref<148xf32, #tpu.memory_space<smem>>
    %304 = vector.broadcast %303 : f32 to vector<16x128xf32>
    %305 = arith.mulf %249, %304 : vector<16x128xf32>
    %306 = arith.addf %302, %305 : vector<16x128xf32>
    %c111 = arith.constant 111 : index
    %307 = memref.load %arg1[%c111] : memref<148xf32, #tpu.memory_space<smem>>
    %308 = vector.broadcast %307 : f32 to vector<16x128xf32>
    %309 = arith.mulf %259, %308 : vector<16x128xf32>
    %310 = arith.addf %306, %309 : vector<16x128xf32>
    %c120 = arith.constant 120 : index
    %311 = memref.load %arg1[%c120] : memref<148xf32, #tpu.memory_space<smem>>
    %312 = vector.broadcast %311 : f32 to vector<16x128xf32>
    %313 = arith.addf %310, %312 : vector<16x128xf32>
    %cst_19 = arith.constant 0.000000e+00 : f32
    %314 = vector.broadcast %cst_19 : f32 to vector<16x128xf32>
    %315 = arith.maximumf %313, %314 : vector<16x128xf32>
    %c67 = arith.constant 67 : index
    %316 = memref.load %arg1[%c67] : memref<148xf32, #tpu.memory_space<smem>>
    %317 = vector.broadcast %316 : f32 to vector<16x128xf32>
    %318 = arith.mulf %209, %317 : vector<16x128xf32>
    %c76 = arith.constant 76 : index
    %319 = memref.load %arg1[%c76] : memref<148xf32, #tpu.memory_space<smem>>
    %320 = vector.broadcast %319 : f32 to vector<16x128xf32>
    %321 = arith.mulf %219, %320 : vector<16x128xf32>
    %322 = arith.addf %318, %321 : vector<16x128xf32>
    %c85 = arith.constant 85 : index
    %323 = memref.load %arg1[%c85] : memref<148xf32, #tpu.memory_space<smem>>
    %324 = vector.broadcast %323 : f32 to vector<16x128xf32>
    %325 = arith.mulf %229, %324 : vector<16x128xf32>
    %326 = arith.addf %322, %325 : vector<16x128xf32>
    %c94 = arith.constant 94 : index
    %327 = memref.load %arg1[%c94] : memref<148xf32, #tpu.memory_space<smem>>
    %328 = vector.broadcast %327 : f32 to vector<16x128xf32>
    %329 = arith.mulf %239, %328 : vector<16x128xf32>
    %330 = arith.addf %326, %329 : vector<16x128xf32>
    %c103 = arith.constant 103 : index
    %331 = memref.load %arg1[%c103] : memref<148xf32, #tpu.memory_space<smem>>
    %332 = vector.broadcast %331 : f32 to vector<16x128xf32>
    %333 = arith.mulf %249, %332 : vector<16x128xf32>
    %334 = arith.addf %330, %333 : vector<16x128xf32>
    %c112 = arith.constant 112 : index
    %335 = memref.load %arg1[%c112] : memref<148xf32, #tpu.memory_space<smem>>
    %336 = vector.broadcast %335 : f32 to vector<16x128xf32>
    %337 = arith.mulf %259, %336 : vector<16x128xf32>
    %338 = arith.addf %334, %337 : vector<16x128xf32>
    %c121 = arith.constant 121 : index
    %339 = memref.load %arg1[%c121] : memref<148xf32, #tpu.memory_space<smem>>
    %340 = vector.broadcast %339 : f32 to vector<16x128xf32>
    %341 = arith.addf %338, %340 : vector<16x128xf32>
    %cst_20 = arith.constant 0.000000e+00 : f32
    %342 = vector.broadcast %cst_20 : f32 to vector<16x128xf32>
    %343 = arith.maximumf %341, %342 : vector<16x128xf32>
    %c68 = arith.constant 68 : index
    %344 = memref.load %arg1[%c68] : memref<148xf32, #tpu.memory_space<smem>>
    %345 = vector.broadcast %344 : f32 to vector<16x128xf32>
    %346 = arith.mulf %209, %345 : vector<16x128xf32>
    %c77 = arith.constant 77 : index
    %347 = memref.load %arg1[%c77] : memref<148xf32, #tpu.memory_space<smem>>
    %348 = vector.broadcast %347 : f32 to vector<16x128xf32>
    %349 = arith.mulf %219, %348 : vector<16x128xf32>
    %350 = arith.addf %346, %349 : vector<16x128xf32>
    %c86 = arith.constant 86 : index
    %351 = memref.load %arg1[%c86] : memref<148xf32, #tpu.memory_space<smem>>
    %352 = vector.broadcast %351 : f32 to vector<16x128xf32>
    %353 = arith.mulf %229, %352 : vector<16x128xf32>
    %354 = arith.addf %350, %353 : vector<16x128xf32>
    %c95 = arith.constant 95 : index
    %355 = memref.load %arg1[%c95] : memref<148xf32, #tpu.memory_space<smem>>
    %356 = vector.broadcast %355 : f32 to vector<16x128xf32>
    %357 = arith.mulf %239, %356 : vector<16x128xf32>
    %358 = arith.addf %354, %357 : vector<16x128xf32>
    %c104 = arith.constant 104 : index
    %359 = memref.load %arg1[%c104] : memref<148xf32, #tpu.memory_space<smem>>
    %360 = vector.broadcast %359 : f32 to vector<16x128xf32>
    %361 = arith.mulf %249, %360 : vector<16x128xf32>
    %362 = arith.addf %358, %361 : vector<16x128xf32>
    %c113 = arith.constant 113 : index
    %363 = memref.load %arg1[%c113] : memref<148xf32, #tpu.memory_space<smem>>
    %364 = vector.broadcast %363 : f32 to vector<16x128xf32>
    %365 = arith.mulf %259, %364 : vector<16x128xf32>
    %366 = arith.addf %362, %365 : vector<16x128xf32>
    %c122 = arith.constant 122 : index
    %367 = memref.load %arg1[%c122] : memref<148xf32, #tpu.memory_space<smem>>
    %368 = vector.broadcast %367 : f32 to vector<16x128xf32>
    %369 = arith.addf %366, %368 : vector<16x128xf32>
    %cst_21 = arith.constant 0.000000e+00 : f32
    %370 = vector.broadcast %cst_21 : f32 to vector<16x128xf32>
    %371 = arith.maximumf %369, %370 : vector<16x128xf32>
    %c69 = arith.constant 69 : index
    %372 = memref.load %arg1[%c69] : memref<148xf32, #tpu.memory_space<smem>>
    %373 = vector.broadcast %372 : f32 to vector<16x128xf32>
    %374 = arith.mulf %209, %373 : vector<16x128xf32>
    %c78 = arith.constant 78 : index
    %375 = memref.load %arg1[%c78] : memref<148xf32, #tpu.memory_space<smem>>
    %376 = vector.broadcast %375 : f32 to vector<16x128xf32>
    %377 = arith.mulf %219, %376 : vector<16x128xf32>
    %378 = arith.addf %374, %377 : vector<16x128xf32>
    %c87 = arith.constant 87 : index
    %379 = memref.load %arg1[%c87] : memref<148xf32, #tpu.memory_space<smem>>
    %380 = vector.broadcast %379 : f32 to vector<16x128xf32>
    %381 = arith.mulf %229, %380 : vector<16x128xf32>
    %382 = arith.addf %378, %381 : vector<16x128xf32>
    %c96 = arith.constant 96 : index
    %383 = memref.load %arg1[%c96] : memref<148xf32, #tpu.memory_space<smem>>
    %384 = vector.broadcast %383 : f32 to vector<16x128xf32>
    %385 = arith.mulf %239, %384 : vector<16x128xf32>
    %386 = arith.addf %382, %385 : vector<16x128xf32>
    %c105 = arith.constant 105 : index
    %387 = memref.load %arg1[%c105] : memref<148xf32, #tpu.memory_space<smem>>
    %388 = vector.broadcast %387 : f32 to vector<16x128xf32>
    %389 = arith.mulf %249, %388 : vector<16x128xf32>
    %390 = arith.addf %386, %389 : vector<16x128xf32>
    %c114 = arith.constant 114 : index
    %391 = memref.load %arg1[%c114] : memref<148xf32, #tpu.memory_space<smem>>
    %392 = vector.broadcast %391 : f32 to vector<16x128xf32>
    %393 = arith.mulf %259, %392 : vector<16x128xf32>
    %394 = arith.addf %390, %393 : vector<16x128xf32>
    %c123 = arith.constant 123 : index
    %395 = memref.load %arg1[%c123] : memref<148xf32, #tpu.memory_space<smem>>
    %396 = vector.broadcast %395 : f32 to vector<16x128xf32>
    %397 = arith.addf %394, %396 : vector<16x128xf32>
    %cst_22 = arith.constant 0.000000e+00 : f32
    %398 = vector.broadcast %cst_22 : f32 to vector<16x128xf32>
    %399 = arith.maximumf %397, %398 : vector<16x128xf32>
    %c70 = arith.constant 70 : index
    %400 = memref.load %arg1[%c70] : memref<148xf32, #tpu.memory_space<smem>>
    %401 = vector.broadcast %400 : f32 to vector<16x128xf32>
    %402 = arith.mulf %209, %401 : vector<16x128xf32>
    %c79 = arith.constant 79 : index
    %403 = memref.load %arg1[%c79] : memref<148xf32, #tpu.memory_space<smem>>
    %404 = vector.broadcast %403 : f32 to vector<16x128xf32>
    %405 = arith.mulf %219, %404 : vector<16x128xf32>
    %406 = arith.addf %402, %405 : vector<16x128xf32>
    %c88 = arith.constant 88 : index
    %407 = memref.load %arg1[%c88] : memref<148xf32, #tpu.memory_space<smem>>
    %408 = vector.broadcast %407 : f32 to vector<16x128xf32>
    %409 = arith.mulf %229, %408 : vector<16x128xf32>
    %410 = arith.addf %406, %409 : vector<16x128xf32>
    %c97 = arith.constant 97 : index
    %411 = memref.load %arg1[%c97] : memref<148xf32, #tpu.memory_space<smem>>
    %412 = vector.broadcast %411 : f32 to vector<16x128xf32>
    %413 = arith.mulf %239, %412 : vector<16x128xf32>
    %414 = arith.addf %410, %413 : vector<16x128xf32>
    %c106 = arith.constant 106 : index
    %415 = memref.load %arg1[%c106] : memref<148xf32, #tpu.memory_space<smem>>
    %416 = vector.broadcast %415 : f32 to vector<16x128xf32>
    %417 = arith.mulf %249, %416 : vector<16x128xf32>
    %418 = arith.addf %414, %417 : vector<16x128xf32>
    %c115 = arith.constant 115 : index
    %419 = memref.load %arg1[%c115] : memref<148xf32, #tpu.memory_space<smem>>
    %420 = vector.broadcast %419 : f32 to vector<16x128xf32>
    %421 = arith.mulf %259, %420 : vector<16x128xf32>
    %422 = arith.addf %418, %421 : vector<16x128xf32>
    %c124 = arith.constant 124 : index
    %423 = memref.load %arg1[%c124] : memref<148xf32, #tpu.memory_space<smem>>
    %424 = vector.broadcast %423 : f32 to vector<16x128xf32>
    %425 = arith.addf %422, %424 : vector<16x128xf32>
    %cst_23 = arith.constant 0.000000e+00 : f32
    %426 = vector.broadcast %cst_23 : f32 to vector<16x128xf32>
    %427 = arith.maximumf %425, %426 : vector<16x128xf32>
    %c71 = arith.constant 71 : index
    %428 = memref.load %arg1[%c71] : memref<148xf32, #tpu.memory_space<smem>>
    %429 = vector.broadcast %428 : f32 to vector<16x128xf32>
    %430 = arith.mulf %209, %429 : vector<16x128xf32>
    %c80 = arith.constant 80 : index
    %431 = memref.load %arg1[%c80] : memref<148xf32, #tpu.memory_space<smem>>
    %432 = vector.broadcast %431 : f32 to vector<16x128xf32>
    %433 = arith.mulf %219, %432 : vector<16x128xf32>
    %434 = arith.addf %430, %433 : vector<16x128xf32>
    %c89 = arith.constant 89 : index
    %435 = memref.load %arg1[%c89] : memref<148xf32, #tpu.memory_space<smem>>
    %436 = vector.broadcast %435 : f32 to vector<16x128xf32>
    %437 = arith.mulf %229, %436 : vector<16x128xf32>
    %438 = arith.addf %434, %437 : vector<16x128xf32>
    %c98 = arith.constant 98 : index
    %439 = memref.load %arg1[%c98] : memref<148xf32, #tpu.memory_space<smem>>
    %440 = vector.broadcast %439 : f32 to vector<16x128xf32>
    %441 = arith.mulf %239, %440 : vector<16x128xf32>
    %442 = arith.addf %438, %441 : vector<16x128xf32>
    %c107 = arith.constant 107 : index
    %443 = memref.load %arg1[%c107] : memref<148xf32, #tpu.memory_space<smem>>
    %444 = vector.broadcast %443 : f32 to vector<16x128xf32>
    %445 = arith.mulf %249, %444 : vector<16x128xf32>
    %446 = arith.addf %442, %445 : vector<16x128xf32>
    %c116 = arith.constant 116 : index
    %447 = memref.load %arg1[%c116] : memref<148xf32, #tpu.memory_space<smem>>
    %448 = vector.broadcast %447 : f32 to vector<16x128xf32>
    %449 = arith.mulf %259, %448 : vector<16x128xf32>
    %450 = arith.addf %446, %449 : vector<16x128xf32>
    %c125 = arith.constant 125 : index
    %451 = memref.load %arg1[%c125] : memref<148xf32, #tpu.memory_space<smem>>
    %452 = vector.broadcast %451 : f32 to vector<16x128xf32>
    %453 = arith.addf %450, %452 : vector<16x128xf32>
    %cst_24 = arith.constant 0.000000e+00 : f32
    %454 = vector.broadcast %cst_24 : f32 to vector<16x128xf32>
    %455 = arith.maximumf %453, %454 : vector<16x128xf32>
    %c72 = arith.constant 72 : index
    %456 = memref.load %arg1[%c72] : memref<148xf32, #tpu.memory_space<smem>>
    %457 = vector.broadcast %456 : f32 to vector<16x128xf32>
    %458 = arith.mulf %209, %457 : vector<16x128xf32>
    %c81 = arith.constant 81 : index
    %459 = memref.load %arg1[%c81] : memref<148xf32, #tpu.memory_space<smem>>
    %460 = vector.broadcast %459 : f32 to vector<16x128xf32>
    %461 = arith.mulf %219, %460 : vector<16x128xf32>
    %462 = arith.addf %458, %461 : vector<16x128xf32>
    %c90 = arith.constant 90 : index
    %463 = memref.load %arg1[%c90] : memref<148xf32, #tpu.memory_space<smem>>
    %464 = vector.broadcast %463 : f32 to vector<16x128xf32>
    %465 = arith.mulf %229, %464 : vector<16x128xf32>
    %466 = arith.addf %462, %465 : vector<16x128xf32>
    %c99 = arith.constant 99 : index
    %467 = memref.load %arg1[%c99] : memref<148xf32, #tpu.memory_space<smem>>
    %468 = vector.broadcast %467 : f32 to vector<16x128xf32>
    %469 = arith.mulf %239, %468 : vector<16x128xf32>
    %470 = arith.addf %466, %469 : vector<16x128xf32>
    %c108 = arith.constant 108 : index
    %471 = memref.load %arg1[%c108] : memref<148xf32, #tpu.memory_space<smem>>
    %472 = vector.broadcast %471 : f32 to vector<16x128xf32>
    %473 = arith.mulf %249, %472 : vector<16x128xf32>
    %474 = arith.addf %470, %473 : vector<16x128xf32>
    %c117 = arith.constant 117 : index
    %475 = memref.load %arg1[%c117] : memref<148xf32, #tpu.memory_space<smem>>
    %476 = vector.broadcast %475 : f32 to vector<16x128xf32>
    %477 = arith.mulf %259, %476 : vector<16x128xf32>
    %478 = arith.addf %474, %477 : vector<16x128xf32>
    %c126 = arith.constant 126 : index
    %479 = memref.load %arg1[%c126] : memref<148xf32, #tpu.memory_space<smem>>
    %480 = vector.broadcast %479 : f32 to vector<16x128xf32>
    %481 = arith.addf %478, %480 : vector<16x128xf32>
    %cst_25 = arith.constant 0.000000e+00 : f32
    %482 = vector.broadcast %cst_25 : f32 to vector<16x128xf32>
    %483 = arith.maximumf %481, %482 : vector<16x128xf32>
    %c73 = arith.constant 73 : index
    %484 = memref.load %arg1[%c73] : memref<148xf32, #tpu.memory_space<smem>>
    %485 = vector.broadcast %484 : f32 to vector<16x128xf32>
    %486 = arith.mulf %209, %485 : vector<16x128xf32>
    %c82 = arith.constant 82 : index
    %487 = memref.load %arg1[%c82] : memref<148xf32, #tpu.memory_space<smem>>
    %488 = vector.broadcast %487 : f32 to vector<16x128xf32>
    %489 = arith.mulf %219, %488 : vector<16x128xf32>
    %490 = arith.addf %486, %489 : vector<16x128xf32>
    %c91 = arith.constant 91 : index
    %491 = memref.load %arg1[%c91] : memref<148xf32, #tpu.memory_space<smem>>
    %492 = vector.broadcast %491 : f32 to vector<16x128xf32>
    %493 = arith.mulf %229, %492 : vector<16x128xf32>
    %494 = arith.addf %490, %493 : vector<16x128xf32>
    %c100 = arith.constant 100 : index
    %495 = memref.load %arg1[%c100] : memref<148xf32, #tpu.memory_space<smem>>
    %496 = vector.broadcast %495 : f32 to vector<16x128xf32>
    %497 = arith.mulf %239, %496 : vector<16x128xf32>
    %498 = arith.addf %494, %497 : vector<16x128xf32>
    %c109 = arith.constant 109 : index
    %499 = memref.load %arg1[%c109] : memref<148xf32, #tpu.memory_space<smem>>
    %500 = vector.broadcast %499 : f32 to vector<16x128xf32>
    %501 = arith.mulf %249, %500 : vector<16x128xf32>
    %502 = arith.addf %498, %501 : vector<16x128xf32>
    %c118 = arith.constant 118 : index
    %503 = memref.load %arg1[%c118] : memref<148xf32, #tpu.memory_space<smem>>
    %504 = vector.broadcast %503 : f32 to vector<16x128xf32>
    %505 = arith.mulf %259, %504 : vector<16x128xf32>
    %506 = arith.addf %502, %505 : vector<16x128xf32>
    %c127 = arith.constant 127 : index
    %507 = memref.load %arg1[%c127] : memref<148xf32, #tpu.memory_space<smem>>
    %508 = vector.broadcast %507 : f32 to vector<16x128xf32>
    %509 = arith.addf %506, %508 : vector<16x128xf32>
    %cst_26 = arith.constant 0.000000e+00 : f32
    %510 = vector.broadcast %cst_26 : f32 to vector<16x128xf32>
    %511 = arith.maximumf %509, %510 : vector<16x128xf32>
    %c128 = arith.constant 128 : index
    %512 = memref.load %arg1[%c128] : memref<148xf32, #tpu.memory_space<smem>>
    %513 = vector.broadcast %512 : f32 to vector<16x128xf32>
    %514 = arith.mulf %287, %513 : vector<16x128xf32>
    %c130 = arith.constant 130 : index
    %515 = memref.load %arg1[%c130] : memref<148xf32, #tpu.memory_space<smem>>
    %516 = vector.broadcast %515 : f32 to vector<16x128xf32>
    %517 = arith.mulf %315, %516 : vector<16x128xf32>
    %518 = arith.addf %514, %517 : vector<16x128xf32>
    %c132 = arith.constant 132 : index
    %519 = memref.load %arg1[%c132] : memref<148xf32, #tpu.memory_space<smem>>
    %520 = vector.broadcast %519 : f32 to vector<16x128xf32>
    %521 = arith.mulf %343, %520 : vector<16x128xf32>
    %522 = arith.addf %518, %521 : vector<16x128xf32>
    %c134 = arith.constant 134 : index
    %523 = memref.load %arg1[%c134] : memref<148xf32, #tpu.memory_space<smem>>
    %524 = vector.broadcast %523 : f32 to vector<16x128xf32>
    %525 = arith.mulf %371, %524 : vector<16x128xf32>
    %526 = arith.addf %522, %525 : vector<16x128xf32>
    %c136 = arith.constant 136 : index
    %527 = memref.load %arg1[%c136] : memref<148xf32, #tpu.memory_space<smem>>
    %528 = vector.broadcast %527 : f32 to vector<16x128xf32>
    %529 = arith.mulf %399, %528 : vector<16x128xf32>
    %530 = arith.addf %526, %529 : vector<16x128xf32>
    %c138 = arith.constant 138 : index
    %531 = memref.load %arg1[%c138] : memref<148xf32, #tpu.memory_space<smem>>
    %532 = vector.broadcast %531 : f32 to vector<16x128xf32>
    %533 = arith.mulf %427, %532 : vector<16x128xf32>
    %534 = arith.addf %530, %533 : vector<16x128xf32>
    %c140 = arith.constant 140 : index
    %535 = memref.load %arg1[%c140] : memref<148xf32, #tpu.memory_space<smem>>
    %536 = vector.broadcast %535 : f32 to vector<16x128xf32>
    %537 = arith.mulf %455, %536 : vector<16x128xf32>
    %538 = arith.addf %534, %537 : vector<16x128xf32>
    %c142 = arith.constant 142 : index
    %539 = memref.load %arg1[%c142] : memref<148xf32, #tpu.memory_space<smem>>
    %540 = vector.broadcast %539 : f32 to vector<16x128xf32>
    %541 = arith.mulf %483, %540 : vector<16x128xf32>
    %542 = arith.addf %538, %541 : vector<16x128xf32>
    %c144 = arith.constant 144 : index
    %543 = memref.load %arg1[%c144] : memref<148xf32, #tpu.memory_space<smem>>
    %544 = vector.broadcast %543 : f32 to vector<16x128xf32>
    %545 = arith.mulf %511, %544 : vector<16x128xf32>
    %546 = arith.addf %542, %545 : vector<16x128xf32>
    %c146 = arith.constant 146 : index
    %547 = memref.load %arg1[%c146] : memref<148xf32, #tpu.memory_space<smem>>
    %548 = vector.broadcast %547 : f32 to vector<16x128xf32>
    %549 = arith.addf %546, %548 : vector<16x128xf32>
    %c129 = arith.constant 129 : index
    %550 = memref.load %arg1[%c129] : memref<148xf32, #tpu.memory_space<smem>>
    %551 = vector.broadcast %550 : f32 to vector<16x128xf32>
    %552 = arith.mulf %287, %551 : vector<16x128xf32>
    %c131 = arith.constant 131 : index
    %553 = memref.load %arg1[%c131] : memref<148xf32, #tpu.memory_space<smem>>
    %554 = vector.broadcast %553 : f32 to vector<16x128xf32>
    %555 = arith.mulf %315, %554 : vector<16x128xf32>
    %556 = arith.addf %552, %555 : vector<16x128xf32>
    %c133 = arith.constant 133 : index
    %557 = memref.load %arg1[%c133] : memref<148xf32, #tpu.memory_space<smem>>
    %558 = vector.broadcast %557 : f32 to vector<16x128xf32>
    %559 = arith.mulf %343, %558 : vector<16x128xf32>
    %560 = arith.addf %556, %559 : vector<16x128xf32>
    %c135 = arith.constant 135 : index
    %561 = memref.load %arg1[%c135] : memref<148xf32, #tpu.memory_space<smem>>
    %562 = vector.broadcast %561 : f32 to vector<16x128xf32>
    %563 = arith.mulf %371, %562 : vector<16x128xf32>
    %564 = arith.addf %560, %563 : vector<16x128xf32>
    %c137 = arith.constant 137 : index
    %565 = memref.load %arg1[%c137] : memref<148xf32, #tpu.memory_space<smem>>
    %566 = vector.broadcast %565 : f32 to vector<16x128xf32>
    %567 = arith.mulf %399, %566 : vector<16x128xf32>
    %568 = arith.addf %564, %567 : vector<16x128xf32>
    %c139 = arith.constant 139 : index
    %569 = memref.load %arg1[%c139] : memref<148xf32, #tpu.memory_space<smem>>
    %570 = vector.broadcast %569 : f32 to vector<16x128xf32>
    %571 = arith.mulf %427, %570 : vector<16x128xf32>
    %572 = arith.addf %568, %571 : vector<16x128xf32>
    %c141 = arith.constant 141 : index
    %573 = memref.load %arg1[%c141] : memref<148xf32, #tpu.memory_space<smem>>
    %574 = vector.broadcast %573 : f32 to vector<16x128xf32>
    %575 = arith.mulf %455, %574 : vector<16x128xf32>
    %576 = arith.addf %572, %575 : vector<16x128xf32>
    %c143 = arith.constant 143 : index
    %577 = memref.load %arg1[%c143] : memref<148xf32, #tpu.memory_space<smem>>
    %578 = vector.broadcast %577 : f32 to vector<16x128xf32>
    %579 = arith.mulf %483, %578 : vector<16x128xf32>
    %580 = arith.addf %576, %579 : vector<16x128xf32>
    %c145 = arith.constant 145 : index
    %581 = memref.load %arg1[%c145] : memref<148xf32, #tpu.memory_space<smem>>
    %582 = vector.broadcast %581 : f32 to vector<16x128xf32>
    %583 = arith.mulf %511, %582 : vector<16x128xf32>
    %584 = arith.addf %580, %583 : vector<16x128xf32>
    %c147 = arith.constant 147 : index
    %585 = memref.load %arg1[%c147] : memref<148xf32, #tpu.memory_space<smem>>
    %586 = vector.broadcast %585 : f32 to vector<16x128xf32>
    %587 = arith.addf %584, %586 : vector<16x128xf32>
    %588 = arith.subf %587, %549 : vector<16x128xf32>
    %589 = math.exp %588 : vector<16x128xf32>
    %cst_27 = arith.constant 1.000000e+00 : f32
    %590 = vector.broadcast %cst_27 : f32 to vector<16x128xf32>
    %591 = arith.addf %590, %589 : vector<16x128xf32>
    %cst_28 = arith.constant 1.000000e+00 : f32
    %592 = vector.broadcast %cst_28 : f32 to vector<16x128xf32>
    %593 = arith.divf %592, %591 : vector<16x128xf32>
    %594 = arith.subf %549, %587 : vector<16x128xf32>
    %595 = math.exp %594 : vector<16x128xf32>
    %cst_29 = arith.constant 1.000000e+00 : f32
    %596 = vector.broadcast %cst_29 : f32 to vector<16x128xf32>
    %597 = arith.addf %596, %595 : vector<16x128xf32>
    %cst_30 = arith.constant 1.000000e+00 : f32
    %598 = vector.broadcast %cst_30 : f32 to vector<16x128xf32>
    %599 = arith.divf %598, %597 : vector<16x128xf32>
    %c0_31 = arith.constant 0 : index
    %c0_32 = arith.constant 0 : index
    %c0_33 = arith.constant 0 : index
    %600 = vector.load %arg3[%c0_31, %c0_32, %c0_33] : memref<4x16x128xf32, #tpu.memory_space<vmem>>, vector<1x16x128xf32>
    %601 = vector.shape_cast %600 : vector<1x16x128xf32> to vector<16x128xf32>
    %602 = vector.shape_cast %593 : vector<16x128xf32> to vector<1x16x128xf32>
    tpu.vector_store %arg3[%c0_31, %c0_32, %c0_33], %602 {strides = array<i32>} : memref<4x16x128xf32, #tpu.memory_space<vmem>>, vector<1x16x128xf32>,
    %c1_34 = arith.constant 1 : index
    %c0_35 = arith.constant 0 : index
    %c0_36 = arith.constant 0 : index
    %603 = vector.load %arg3[%c1_34, %c0_35, %c0_36] : memref<4x16x128xf32, #tpu.memory_space<vmem>>, vector<1x16x128xf32>
    %604 = vector.shape_cast %603 : vector<1x16x128xf32> to vector<16x128xf32>
    %605 = vector.shape_cast %599 : vector<16x128xf32> to vector<1x16x128xf32>
    tpu.vector_store %arg3[%c1_34, %c0_35, %c0_36], %605 {strides = array<i32>} : memref<4x16x128xf32, #tpu.memory_space<vmem>>, vector<1x16x128xf32>,
    %c2_37 = arith.constant 2 : index
    %c0_38 = arith.constant 0 : index
    %c0_39 = arith.constant 0 : index
    %606 = vector.load %arg3[%c2_37, %c0_38, %c0_39] : memref<4x16x128xf32, #tpu.memory_space<vmem>>, vector<1x16x128xf32>
    %607 = vector.shape_cast %606 : vector<1x16x128xf32> to vector<16x128xf32>
    %608 = vector.shape_cast %193 : vector<16x128xf32> to vector<1x16x128xf32>
    tpu.vector_store %arg3[%c2_37, %c0_38, %c0_39], %608 {strides = array<i32>} : memref<4x16x128xf32, #tpu.memory_space<vmem>>, vector<1x16x128xf32>,
    %c3_40 = arith.constant 3 : index
    %c0_41 = arith.constant 0 : index
    %c0_42 = arith.constant 0 : index
    %609 = vector.load %arg3[%c3_40, %c0_41, %c0_42] : memref<4x16x128xf32, #tpu.memory_space<vmem>>, vector<1x16x128xf32>
    %610 = vector.shape_cast %609 : vector<1x16x128xf32> to vector<16x128xf32>
    %611 = vector.shape_cast %199 : vector<16x128xf32> to vector<1x16x128xf32>
    tpu.vector_store %arg3[%c3_40, %c0_41, %c0_42], %611 {strides = array<i32>} : memref<4x16x128xf32, #tpu.memory_space<vmem>>, vector<1x16x128xf32>,
    return
  }
  func.func @transform_0(%arg0: i32) -> i32 {
    %c0_i32 = arith.constant 0 : i32
    %c0_i32_0 = arith.constant 0 : i32
    return %c0_i32 : i32
  }
  func.func @transform_1(%arg0: i32) -> (i32, i32, i32) {
    %c0_i32 = arith.constant 0 : i32
    %c0_i32_0 = arith.constant 0 : i32
    %c0_i32_1 = arith.constant 0 : i32
    return %c0_i32, %arg0, %c0_i32_0 : i32, i32, i32
  }
  func.func @transform_2(%arg0: i32) -> (i32, i32, i32) {
    %c0_i32 = arith.constant 0 : i32
    %c0_i32_0 = arith.constant 0 : i32
    %c0_i32_1 = arith.constant 0 : i32
    return %c0_i32, %arg0, %c0_i32_0 : i32, i32, i32
  }
}

</mosaic_0001>

<llo_original>
// kernel: autoencoder_extend_forward.1
$region0: #{autoencoder_extend_forward.1}
  #allocation0 [shape = 'u32[]', space=smem, size = 0x4, offset = 0x4, fixed_abs, tag = 'smem constant byte address 0x4 - core index']
  #allocation1 [shape = 'u32[144,128]{1,0:T(1,128)}', space=vmem, size = 0x12000, scoped, tag = 'internal scratch']
  %s0 = inlined_call_operand.vmem [shape: f32[148], index: 0, kind: input, shape index: {}]
  %s1 = inlined_call_operand.vmem [shape: f32[2,32,128], index: 1, kind: input, shape index: {}]
  %s2 = inlined_call_operand.vmem [shape: f32[4,32,128], index: 2, kind: output, shape index: {}]
  %s3 = sld [smem:[#allocation0]]
  $region117: #{autoencoder_extend_forward.1} parent=0
    _
  %s5 = ssub.s32 1, %s3
  %s6 = scalar_select 0, %s5, %s3
  $region1: #{autoencoder_extend_forward.1} parent=0
    #allocation2 [shape = 'u8[1024]{0}', space=smem, size = 0x400, scoped, tag = 'input window, operand 0, single buffered']
    #allocation3 [shape = 's32[2]{0}', space=sflag, size = 0x8, scoped, tag = 'scoped memory for autoencoder_extend_forward.1']
    #allocation4 [shape = 'u8[32768]{0}', space=vmem, size = 0x8000, scoped, tag = 'input window, operand 1']
    #allocation5 [shape = 'u8[65536]{0}', space=vmem, size = 0x10000, scoped, tag = 'output window, operand 0']
    %7 = vsyncpa [#allocation3], 0
    loop: start=0, step=1, limit=4
    $region2: #{autoencoder_extend_forward.1} parent=1 // loop_pre_header
      _
    $region3: #{autoencoder_extend_forward.1} parent=1 // loop_header
      %s9 = sphi 0, %s13
      %p10 = scmp.ge.s32.totalorder %s9, 4
      %s17 = sphi 0, %s17
      %s19 = sphi 0, %s17
      %s20 = sphi 0, %s19
      %s34 = sphi 0, %s20
      %s40 = sphi 0, %s42
      %s43 = sphi 0, %s40
      %s44 = sphi 0, %s43
      %s60 = sphi 0, %s44
      %s66 = sphi 0, %s68
      %s69 = sphi 0, %s66
      %s70 = sphi 0, %s69
      %s86 = sphi 0, %s70
    $region4: #{autoencoder_extend_forward.1} parent=1 // loop_header_branch
      %12 = sbr.rel (%p10) target = $region8
    $region5: #{autoencoder_extend_forward.1} parent=1 // loop_body
      %s14 = ssub.s32 %s9, 1
      %s15 = ssub.s32 %s9, 2
      %s16 = sadd.s32 %s9, 1
      %s18 = sadd.s32 %s17, 1
      %p21 = scmp.eq.s32.totalorder %s9, 1
      %p22 = scmp.ne.s32.totalorder %s17, %s19
      %p23 = scmp.eq.s32.totalorder %s9, 0
      %p24 = por %p22, %p23
      %p25 = scmp.ne.s32.totalorder %s17, %s19
      %p26 = scmp.eq.s32.totalorder %s14, 1
      %p27 = por %p25, %p26
      %p28 = scmp.ne.s32.totalorder %s19, %s20
      %p29 = scmp.eq.s32.totalorder %s14, 0
      %p30 = por %p28, %p29
      %p31 = scmp.ne.s32.totalorder %s19, %s20
      %p32 = scmp.eq.s32.totalorder %s15, 1
      %p33 = por %p31, %p32
      %p35 = scmp.ne.s32.totalorder %s20, %s34
      %p36 = scmp.eq.s32.totalorder %s15, 0
      %p37 = por %p35, %p36
      %s38 = ssub.s32 %s9, %s16
      %p39 = scmp.eq.s32.totalorder %s38, 0
      %s41 = sadd.s32 %s40, 1
      %s42 = scalar_select %p39, %s40, %s41
      %p45 = pneg %p39
      %p46 = scmp.eq.s32.totalorder %s9, 1
      %p47 = por %p45, %p46
      %p48 = scmp.ne.s32.totalorder %s40, %s43
      %p49 = scmp.eq.s32.totalorder %s9, 0
      %p50 = por %p48, %p49
      %p51 = scmp.ne.s32.totalorder %s40, %s43
      %p52 = scmp.eq.s32.totalorder %s14, 1
      %p53 = por %p51, %p52
      %p54 = scmp.ne.s32.totalorder %s43, %s44
      %p55 = scmp.eq.s32.totalorder %s14, 0
      %p56 = por %p54, %p55
      %p57 = scmp.ne.s32.totalorder %s43, %s44
      %p58 = scmp.eq.s32.totalorder %s15, 1
      %p59 = por %p57, %p58
      %p61 = scmp.ne.s32.totalorder %s44, %s60
      %p62 = scmp.eq.s32.totalorder %s15, 0
      %p63 = por %p61, %p62
      %s64 = ssub.s32 %s9, %s16
      %p65 = scmp.eq.s32.totalorder %s64, 0
      %s67 = sadd.s32 %s66, 1
      %s68 = scalar_select %p65, %s66, %s67
      %p71 = pneg %p65
      %p72 = scmp.eq.s32.totalorder %s9, 1
      %p73 = por %p71, %p72
      %p74 = scmp.ne.s32.totalorder %s66, %s69
      %p75 = scmp.eq.s32.totalorder %s9, 0
      %p76 = por %p74, %p75
      %p77 = scmp.ne.s32.totalorder %s66, %s69
      %p78 = scmp.eq.s32.totalorder %s14, 1
      %p79 = por %p77, %p78
      %p80 = scmp.ne.s32.totalorder %s69, %s70
      %p81 = scmp.eq.s32.totalorder %s14, 0
      %p82 = por %p80, %p81
      %p83 = scmp.ne.s32.totalorder %s69, %s70
      %p84 = scmp.eq.s32.totalorder %s15, 1
      %p85 = por %p83, %p84
      %p87 = scmp.ne.s32.totalorder %s70, %s86
      %p88 = scmp.eq.s32.totalorder %s15, 0
      %p89 = por %p87, %p88
      %p90 = scmp.le.s32.totalorder 1, %s9
      %p91 = scmp.lt.s32.totalorder %s9, 3
      %p92 = pnand %p90, %p91
      %p93 = pneg %p92
      // Predicated region
      $region9: #{autoencoder_extend_forward.1} parent=5 // pred_check
        _
      $region10: #{autoencoder_extend_forward.1} parent=5 // pred_check_branch
        %95 = sbr.rel (%p92) target = $region12
      $region11: #{autoencoder_extend_forward.1} parent=5 // pred_region
        %s96 = ssub.s32 %s9, 1
        // Predicated region
        $region13: #{autoencoder_extend_forward.1} parent=11 // pred_check
          %p97 = pneg %p30
        $region14: #{autoencoder_extend_forward.1} parent=11 // pred_check_branch
          %99 = sbr.rel (%p97) target = $region16
        $region15: #{autoencoder_extend_forward.1} parent=11 // pred_region
          %s101 = ssub.s32 32, 32
          %102 = vsyncadd [#allocation3], %s101
          %s104 = sshll.u32 %s0, 4
          %s105 = int_to_ptr.vmem [resolvable:$true] %s104
          %107 = dma.vmem_to_smem %s105, 32, [#allocation2], [#allocation3]
        $region16: #{autoencoder_extend_forward.1} parent=11 // pred_fallthru
          _
      $region12: #{autoencoder_extend_forward.1} parent=5 // pred_fallthru
        _
      %p108 = scmp.lt.s32.totalorder %s9, 2
      // Predicated region
      $region17: #{autoencoder_extend_forward.1} parent=5 // pred_check
        %p109 = pneg %p108
      $region18: #{autoencoder_extend_forward.1} parent=5 // pred_check_branch
        %111 = sbr.rel (%p109) target = $region20
      $region19: #{autoencoder_extend_forward.1} parent=5 // pred_region
        // Predicated region
        $region21: #{autoencoder_extend_forward.1} parent=19 // pred_check
          %p112 = pneg %p50
        $region22: #{autoencoder_extend_forward.1} parent=19 // pred_check_branch
          %114 = sbr.rel (%p112) target = $region24
        $region23: #{autoencoder_extend_forward.1} parent=19 // pred_region
          %s115 = sand.u32 %s40, 1
          %s116 = sand.u32 %s40, 1
          %s117 = smul.addr %s116, 32
          %s118 = scalar_lea.vmem [#allocation4], %s117
          %s119 = smul.u32 2, %s9
          %s120 = smul.addr %s119, 8
          %s121 = scalar_lea.vmem %s1, %s120
          // Predicated region
          $region25: #{autoencoder_extend_forward.1} parent=23 // pred_check
            _
          $region26: #{autoencoder_extend_forward.1} parent=23 // pred_check_branch
            %123 = sbr.rel (0) target = $region28
          $region27: #{autoencoder_extend_forward.1} parent=23 // pred_region
            // Predicated region
            $region29: #{autoencoder_extend_forward.1} parent=27 // pred_check
              _
            $region30: #{autoencoder_extend_forward.1} parent=27 // pred_check_branch
              %125 = sbr.rel (0) target = $region32
            $region31: #{autoencoder_extend_forward.1} parent=27 // pred_region
              // Predicated region
              $region44: #{autoencoder_extend_forward.1} parent=31 // pred_check
                _
              $region45: #{autoencoder_extend_forward.1} parent=31 // pred_check_branch
                %146 = sbr.rel (0) target = $region47
              $region46: #{autoencoder_extend_forward.1} parent=31 // pred_region
                loop: start=0, step=1, limit=1
                $region48: #{autoencoder_extend_forward.1} parent=46 // loop_pre_header
                  _
                $region49: #{autoencoder_extend_forward.1} parent=46 // loop_header
                  %s148 = sphi 0, %s152
                  %p149 = scmp.ge.s32.totalorder %s148, 1
                  %s153 = sphi %s121, %s121
                  %s154 = sphi %s118, %s118
                $region50: #{autoencoder_extend_forward.1} parent=46 // loop_header_branch
                  %151 = sbr.rel (%p149) target = $region54
                $region51: #{autoencoder_extend_forward.1} parent=46 // loop_body
                  %v155 = vld [vmem:[%s153] sm:$0xff]
                  %156 = vst [vmem:[%s154] sm:$0xff] %v155
                  %v157 = vld [vmem:[%s153 + $0x8] sm:$0xff]
                  %158 = vst [vmem:[%s154 + $0x8] sm:$0xff] %v157
                  %v159 = vld [vmem:[%s153 + $0x20] sm:$0xff]
                  %160 = vst [vmem:[%s154 + $0x10] sm:$0xff] %v159
                  %v161 = vld [vmem:[%s153 + $0x28] sm:$0xff]
                  %162 = vst [vmem:[%s154 + $0x18] sm:$0xff] %v161
                $region52: #{autoencoder_extend_forward.1} parent=46 // loop_footer
                  %s152 = sadd.s32 1, %s148
                $region53: #{autoencoder_extend_forward.1} parent=46 // loop_footer_branch
                  %147 = sbr.rel target = $region49
                $region54: #{autoencoder_extend_forward.1} parent=46 // loop_exit
                  _
              $region47: #{autoencoder_extend_forward.1} parent=31 // pred_fallthru
                _
              // Predicated region
              $region55: #{autoencoder_extend_forward.1} parent=31 // pred_check
                _
              $region56: #{autoencoder_extend_forward.1} parent=31 // pred_check_branch
                %164 = sbr.rel target = $region58
              $region57: #{autoencoder_extend_forward.1} parent=31 // pred_region
                _
              $region58: #{autoencoder_extend_forward.1} parent=31 // pred_fallthru
                _
            $region32: #{autoencoder_extend_forward.1} parent=27 // pred_fallthru
              _
            // Predicated region
            $region33: #{autoencoder_extend_forward.1} parent=27 // pred_check
              _
            $region34: #{autoencoder_extend_forward.1} parent=27 // pred_check_branch
              %127 = sbr.rel target = $region36
            $region35: #{autoencoder_extend_forward.1} parent=27 // pred_region
              loop: start=0, step=1, limit=1
              $region37: #{autoencoder_extend_forward.1} parent=35 // loop_pre_header
                _
              $region38: #{autoencoder_extend_forward.1} parent=35 // loop_header
                %s130 = sphi 0, %s134
                %p131 = scmp.ge.s32.totalorder %s130, 1
                %s135 = sphi %s121, %s121
                %s136 = sphi %s118, %s118
              $region39: #{autoencoder_extend_forward.1} parent=35 // loop_header_branch
                %133 = sbr.rel (%p131) target = $region43
              $region40: #{autoencoder_extend_forward.1} parent=35 // loop_body
                %v137 = vld [vmem:[%s135] sm:$0xff]
                %138 = vst [vmem:[%s136] sm:$0xff] %v137
                %v139 = vld [vmem:[%s135 + $0x8] sm:$0xff]
                %140 = vst [vmem:[%s136 + $0x8] sm:$0xff] %v139
                %v141 = vld [vmem:[%s135 + $0x20] sm:$0xff]
                %142 = vst [vmem:[%s136 + $0x10] sm:$0xff] %v141
                %v143 = vld [vmem:[%s135 + $0x28] sm:$0xff]
                %144 = vst [vmem:[%s136 + $0x18] sm:$0xff] %v143
              $region41: #{autoencoder_extend_forward.1} parent=35 // loop_footer
                %s134 = sadd.s32 1, %s130
              $region42: #{autoencoder_extend_forward.1} parent=35 // loop_footer_branch
                %129 = sbr.rel target = $region38
              $region43: #{autoencoder_extend_forward.1} parent=35 // loop_exit
                _
            $region36: #{autoencoder_extend_forward.1} parent=27 // pred_fallthru
              _
          $region28: #{autoencoder_extend_forward.1} parent=23 // pred_fallthru
            _
          %165 = vnop
        $region24: #{autoencoder_extend_forward.1} parent=19 // pred_fallthru
          _
      $region20: #{autoencoder_extend_forward.1} parent=5 // pred_fallthru
        _
      %p166 = scmp.le.s32.totalorder 1, %s9
      %p167 = scmp.lt.s32.totalorder %s9, 3
      %p168 = pnand %p166, %p167
      %p169 = pneg %p168
      // Predicated region
      $region59: #{autoencoder_extend_forward.1} parent=5 // pred_check
        _
      $region60: #{autoencoder_extend_forward.1} parent=5 // pred_check_branch
        %171 = sbr.rel (%p168) target = $region62
      $region61: #{autoencoder_extend_forward.1} parent=5 // pred_region
        %s172 = ssub.s32 %s9, 1
        // Predicated region
        $region63: #{autoencoder_extend_forward.1} parent=61 // pred_check
          %p173 = pneg %p30
        $region64: #{autoencoder_extend_forward.1} parent=61 // pred_check_branch
          %175 = sbr.rel (%p173) target = $region66
        $region65: #{autoencoder_extend_forward.1} parent=61 // pred_region
          %176 = dma.done [#allocation3], 32
        $region66: #{autoencoder_extend_forward.1} parent=61 // pred_fallthru
          _
        %s177 = sand.u32 %s43, 1
        %s178 = sand.u32 %s43, 1
        %s179 = smul.addr %s178, 32
        %s180 = scalar_lea.vmem [#allocation4], %s179
        // Predicated region
        $region67: #{autoencoder_extend_forward.1} parent=61 // pred_check
          %p181 = pneg %p56
        $region68: #{autoencoder_extend_forward.1} parent=61 // pred_check_branch
          %183 = sbr.rel (%p181) target = $region70
        $region69: #{autoencoder_extend_forward.1} parent=61 // pred_region
          _
        $region70: #{autoencoder_extend_forward.1} parent=61 // pred_fallthru
          _
        %184 = sfence
        %p185 = pneg %p30
        %p186 = pneg %p27
        %s187 = sand.u32 %s43, 1
        %s188 = sand.u32 %s43, 1
        %s189 = smul.addr %s188, 32
        %s190 = scalar_lea.vmem [#allocation4], %s189
        %p191 = pneg %p56
        %p192 = pneg %p53
        %p193 = pneg %p82
        %p194 = pneg %p79
        %s195 = sand.u32 %s69, 1
        %s196 = sand.u32 %s69, 1
        %s197 = smul.addr %s196, 64
        %s198 = scalar_lea.vmem [#allocation5], %s197
        %s199 = smul.u32 2, %s14
        %s200 = smul.u32 2, %s14
        %v201 = vld [vmem:[%s180] sm:$0xff]
        %v202 = vld [vmem:[%s180 + $0x8] sm:$0xff]
        %s203 = scalar_lea.vmem %s180, 16 [#allocation4]
        %v204 = vld [vmem:[%s203] sm:$0xff]
        %v205 = vld [vmem:[%s203 + $0x8] sm:$0xff]
        %s206 = sld [smem:[#allocation2]]
        %v207 = vstv %s206
        %v208 = vmul.f32 %v201, %v207
        %v209 = vmul.f32 %v202, %v207
        %s210 = sld [smem:[#allocation2 + $0x9]]
        %v211 = vstv %s210
        %v212 = vmul.f32 %v204, %v211
        %v213 = vmul.f32 %v205, %v211
        %v214 = vadd.f32 %v208, %v212
        %v215 = vadd.f32 %v209, %v213
        %s216 = sld [smem:[#allocation2 + $0x12]]
        %v217 = vstv %s216
        %v218 = vadd.f32 %v214, %v217
        %v219 = vadd.f32 %v215, %v217
        %v220 = vmax.f32 %v218, 0.0
        %v221 = vmax.f32 %v219, 0.0
        %s222 = sld [smem:[#allocation2 + $0x1]]
        %v223 = vstv %s222
        %v224 = vmul.f32 %v201, %v223
        %v225 = vmul.f32 %v202, %v223
        %s226 = sld [smem:[#allocation2 + $0xa]]
        %v227 = vstv %s226
        %v228 = vmul.f32 %v204, %v227
        %v229 = vmul.f32 %v205, %v227
        %v230 = vadd.f32 %v224, %v228
        %v231 = vadd.f32 %v225, %v229
        %s232 = sld [smem:[#allocation2 + $0x13]]
        %v233 = vstv %s232
        %v234 = vadd.f32 %v230, %v233
        %v235 = vadd.f32 %v231, %v233
        %v236 = vmax.f32 %v234, 0.0
        %v237 = vmax.f32 %v235, 0.0
        %s238 = sld [smem:[#allocation2 + $0x2]]
        %v239 = vstv %s238
        %v240 = vmul.f32 %v201, %v239
        %v241 = vmul.f32 %v202, %v239
        %s242 = sld [smem:[#allocation2 + $0xb]]
        %v243 = vstv %s242
        %v244 = vmul.f32 %v204, %v243
        %v245 = vmul.f32 %v205, %v243
        %v246 = vadd.f32 %v240, %v244
        %v247 = vadd.f32 %v241, %v245
        %s248 = sld [smem:[#allocation2 + $0x14]]
        %v249 = vstv %s248
        %v250 = vadd.f32 %v246, %v249
        %v251 = vadd.f32 %v247, %v249
        %v252 = vmax.f32 %v250, 0.0
        %v253 = vmax.f32 %v251, 0.0
        %s254 = sld [smem:[#allocation2 + $0x3]]
        %v255 = vstv %s254
        %v256 = vmul.f32 %v201, %v255
        %v257 = vmul.f32 %v202, %v255
        %s258 = sld [smem:[#allocation2 + $0xc]]
        %v259 = vstv %s258
        %v260 = vmul.f32 %v204, %v259
        %v261 = vmul.f32 %v205, %v259
        %v262 = vadd.f32 %v256, %v260
        %v263 = vadd.f32 %v257, %v261
        %s264 = sld [smem:[#allocation2 + $0x15]]
        %v265 = vstv %s264
        %v266 = vadd.f32 %v262, %v265
        %v267 = vadd.f32 %v263, %v265
        %v268 = vmax.f32 %v266, 0.0
        %v269 = vmax.f32 %v267, 0.0
        %s270 = sld [smem:[#allocation2 + $0x4]]
        %v271 = vstv %s270
        %v272 = vmul.f32 %v201, %v271
        %v273 = vmul.f32 %v202, %v271
        %s274 = sld [smem:[#allocation2 + $0xd]]
        %v275 = vstv %s274
        %v276 = vmul.f32 %v204, %v275
        %v277 = vmul.f32 %v205, %v275
        %v278 = vadd.f32 %v272, %v276
        %v279 = vadd.f32 %v273, %v277
        %s280 = sld [smem:[#allocation2 + $0x16]]
        %v281 = vstv %s280
        %v282 = vadd.f32 %v278, %v281
        %v283 = vadd.f32 %v279, %v281
        %v284 = vmax.f32 %v282, 0.0
        %v285 = vmax.f32 %v283, 0.0
        %s286 = sld [smem:[#allocation2 + $0x5]]
        %v287 = vstv %s286
        %v288 = vmul.f32 %v201, %v287
        %v289 = vmul.f32 %v202, %v287
        %s290 = sld [smem:[#allocation2 + $0xe]]
        %v291 = vstv %s290
        %v292 = vmul.f32 %v204, %v291
        %v293 = vmul.f32 %v205, %v291
        %v294 = vadd.f32 %v288, %v292
        %v295 = vadd.f32 %v289, %v293
        %s296 = sld [smem:[#allocation2 + $0x17]]
        %v297 = vstv %s296
        %v298 = vadd.f32 %v294, %v297
        %v299 = vadd.f32 %v295, %v297
        %v300 = vmax.f32 %v298, 0.0
        %v301 = vmax.f32 %v299, 0.0
        %s302 = sld [smem:[#allocation2 + $0x6]]
        %v303 = vstv %s302
        %v304 = vmul.f32 %v201, %v303
        %v305 = vmul.f32 %v202, %v303
        %s306 = sld [smem:[#allocation2 + $0xf]]
        %v307 = vstv %s306
        %v308 = vmul.f32 %v204, %v307
        %v309 = vmul.f32 %v205, %v307
        %v310 = vadd.f32 %v304, %v308
        %v311 = vadd.f32 %v305, %v309
        %s312 = sld [smem:[#allocation2 + $0x18]]
        %v313 = vstv %s312
        %v314 = vadd.f32 %v310, %v313
        %v315 = vadd.f32 %v311, %v313
        %v316 = vmax.f32 %v314, 0.0
        %v317 = vmax.f32 %v315, 0.0
        %s318 = sld [smem:[#allocation2 + $0x7]]
        %v319 = vstv %s318
        %v320 = vmul.f32 %v201, %v319
        %v321 = vmul.f32 %v202, %v319
        %s322 = sld [smem:[#allocation2 + $0x10]]
        %v323 = vstv %s322
        %v324 = vmul.f32 %v204, %v323
        %v325 = vmul.f32 %v205, %v323
        %v326 = vadd.f32 %v320, %v324
        %v327 = vadd.f32 %v321, %v325
        %s328 = sld [smem:[#allocation2 + $0x19]]
        %v329 = vstv %s328
        %v330 = vadd.f32 %v326, %v329
        %v331 = vadd.f32 %v327, %v329
        %v332 = vmax.f32 %v330, 0.0
        %v333 = vmax.f32 %v331, 0.0
        %s334 = sld [smem:[#allocation2 + $0x8]]
        %v335 = vstv %s334
        %v336 = vmul.f32 %v201, %v335
        %v337 = vmul.f32 %v202, %v335
        %s338 = sld [smem:[#allocation2 + $0x11]]
        %v339 = vstv %s338
        %v340 = vmul.f32 %v204, %v339
        %v341 = vmul.f32 %v205, %v339
        %v342 = vadd.f32 %v336, %v340
        %v343 = vadd.f32 %v337, %v341
        %s344 = sld [smem:[#allocation2 + $0x1a]]
        %v345 = vstv %s344
        %v346 = vadd.f32 %v342, %v345
        %v347 = vadd.f32 %v343, %v345
        %v348 = vmax.f32 %v346, 0.0
        %v349 = vmax.f32 %v347, 0.0
        %s350 = sld [smem:[#allocation2 + $0x1b]]
        %v351 = vstv %s350
        %v352 = vmul.f32 %v220, %v351
        %v353 = vmul.f32 %v221, %v351
        %s354 = sld [smem:[#allocation2 + $0x1d]]
        %v355 = vstv %s354
        %v356 = vmul.f32 %v236, %v355
        %v357 = vmul.f32 %v237, %v355
        %v358 = vadd.f32 %v352, %v356
        %v359 = vadd.f32 %v353, %v357
        %s360 = sld [smem:[#allocation2 + $0x1f]]
        %v361 = vstv %s360
        %v362 = vmul.f32 %v252, %v361
        %v363 = vmul.f32 %v253, %v361
        %v364 = vadd.f32 %v358, %v362
        %v365 = vadd.f32 %v359, %v363
        %s366 = sld [smem:[#allocation2 + $0x21]]
        %v367 = vstv %s366
        %v368 = vmul.f32 %v268, %v367
        %v369 = vmul.f32 %v269, %v367
        %v370 = vadd.f32 %v364, %v368
        %v371 = vadd.f32 %v365, %v369
        %s372 = sld [smem:[#allocation2 + $0x23]]
        %v373 = vstv %s372
        %v374 = vmul.f32 %v284, %v373
        %v375 = vmul.f32 %v285, %v373
        %v376 = vadd.f32 %v370, %v374
        %v377 = vadd.f32 %v371, %v375
        %s378 = sld [smem:[#allocation2 + $0x25]]
        %v379 = vstv %s378
        %v380 = vmul.f32 %v300, %v379
        %v381 = vmul.f32 %v301, %v379
        %v382 = vadd.f32 %v376, %v380
        %v383 = vadd.f32 %v377, %v381
        %s384 = sld [smem:[#allocation2 + $0x27]]
        %v385 = vstv %s384
        %v386 = vmul.f32 %v316, %v385
        %v387 = vmul.f32 %v317, %v385
        %v388 = vadd.f32 %v382, %v386
        %v389 = vadd.f32 %v383, %v387
        %s390 = sld [smem:[#allocation2 + $0x29]]
        %v391 = vstv %s390
        %v392 = vmul.f32 %v332, %v391
        %v393 = vmul.f32 %v333, %v391
        %v394 = vadd.f32 %v388, %v392
        %v395 = vadd.f32 %v389, %v393
        %s396 = sld [smem:[#allocation2 + $0x2b]]
        %v397 = vstv %s396
        %v398 = vmul.f32 %v348, %v397
        %v399 = vmul.f32 %v349, %v397
        %v400 = vadd.f32 %v394, %v398
        %v401 = vadd.f32 %v395, %v399
        %s402 = sld [smem:[#allocation2 + $0x2d]]
        %v403 = vstv %s402
        %v404 = vadd.f32 %v400, %v403
        %v405 = vadd.f32 %v401, %v403
        %s406 = sld [smem:[#allocation2 + $0x1c]]
        %v407 = vstv %s406
        %v408 = vmul.f32 %v220, %v407
        %v409 = vmul.f32 %v221, %v407
        %s410 = sld [smem:[#allocation2 + $0x1e]]
        %v411 = vstv %s410
        %v412 = vmul.f32 %v236, %v411
        %v413 = vmul.f32 %v237, %v411
        %v414 = vadd.f32 %v408, %v412
        %v415 = vadd.f32 %v409, %v413
        %s416 = sld [smem:[#allocation2 + $0x20]]
        %v417 = vstv %s416
        %v418 = vmul.f32 %v252, %v417
        %v419 = vmul.f32 %v253, %v417
        %v420 = vadd.f32 %v414, %v418
        %v421 = vadd.f32 %v415, %v419
        %s422 = sld [smem:[#allocation2 + $0x22]]
        %v423 = vstv %s422
        %v424 = vmul.f32 %v268, %v423
        %v425 = vmul.f32 %v269, %v423
        %v426 = vadd.f32 %v420, %v424
        %v427 = vadd.f32 %v421, %v425
        %s428 = sld [smem:[#allocation2 + $0x24]]
        %v429 = vstv %s428
        %v430 = vmul.f32 %v284, %v429
        %v431 = vmul.f32 %v285, %v429
        %v432 = vadd.f32 %v426, %v430
        %v433 = vadd.f32 %v427, %v431
        %s434 = sld [smem:[#allocation2 + $0x26]]
        %v435 = vstv %s434
        %v436 = vmul.f32 %v300, %v435
        %v437 = vmul.f32 %v301, %v435
        %v438 = vadd.f32 %v432, %v436
        %v439 = vadd.f32 %v433, %v437
        %s440 = sld [smem:[#allocation2 + $0x28]]
        %v441 = vstv %s440
        %v442 = vmul.f32 %v316, %v441
        %v443 = vmul.f32 %v317, %v441
        %v444 = vadd.f32 %v438, %v442
        %v445 = vadd.f32 %v439, %v443
        %s446 = sld [smem:[#allocation2 + $0x2a]]
        %v447 = vstv %s446
        %v448 = vmul.f32 %v332, %v447
        %v449 = vmul.f32 %v333, %v447
        %v450 = vadd.f32 %v444, %v448
        %v451 = vadd.f32 %v445, %v449
        %s452 = sld [smem:[#allocation2 + $0x2c]]
        %v453 = vstv %s452
        %v454 = vmul.f32 %v348, %v453
        %v455 = vmul.f32 %v349, %v453
        %v456 = vadd.f32 %v450, %v454
        %v457 = vadd.f32 %v451, %v455
        %s458 = sld [smem:[#allocation2 + $0x2e]]
        %v459 = vstv %s458
        %v460 = vadd.f32 %v456, %v459
        %v461 = vadd.f32 %v457, %v459
        %v462 = vsub.f32 %v460, %v404
        %v463 = vsub.f32 %v461, %v405
        %v464 = vmul.f32 %v462, 1.442695
        %v465 = vpow.pop %v464
        %v466 = vmul.f32 %v463, 1.442695
        %v467 = vpow.pop %v466
        %v468 = vadd.f32 %v465, 1.0
        %v469 = vadd.f32 %v467, 1.0
        %v470 = vrcp.pop %v468
        %v471 = vmul.f32 1.0, %v470
        %v472 = vrcp.pop %v469
        %v473 = vmul.f32 1.0, %v472
        %v474 = vsub.f32 %v404, %v460
        %v475 = vsub.f32 %v405, %v461
        %v476 = vmul.f32 %v474, 1.442695
        %v477 = vpow.pop %v476
        %v478 = vmul.f32 %v475, 1.442695
        %v479 = vpow.pop %v478
        %v480 = vadd.f32 %v477, 1.0
        %v481 = vadd.f32 %v479, 1.0
        %v482 = vrcp.pop %v480
        %v483 = vmul.f32 1.0, %v482
        %v484 = vrcp.pop %v481
        %v485 = vmul.f32 1.0, %v484
        %s486 = sld [smem:[#allocation2 + $0x2f]]
        %v487 = vstv %s486
        %v488 = vmul.f32 %v471, %v487
        %v489 = vmul.f32 %v473, %v487
        %s490 = sld [smem:[#allocation2 + $0x35]]
        %v491 = vstv %s490
        %v492 = vmul.f32 %v483, %v491
        %v493 = vmul.f32 %v485, %v491
        %v494 = vadd.f32 %v488, %v492
        %v495 = vadd.f32 %v489, %v493
        %s496 = sld [smem:[#allocation2 + $0x3b]]
        %v497 = vstv %s496
        %v498 = vadd.f32 %v494, %v497
        %v499 = vadd.f32 %v495, %v497
        %s500 = sld [smem:[#allocation2 + $0x30]]
        %v501 = vstv %s500
        %v502 = vmul.f32 %v471, %v501
        %v503 = vmul.f32 %v473, %v501
        %s504 = sld [smem:[#allocation2 + $0x36]]
        %v505 = vstv %s504
        %v506 = vmul.f32 %v483, %v505
        %v507 = vmul.f32 %v485, %v505
        %v508 = vadd.f32 %v502, %v506
        %v509 = vadd.f32 %v503, %v507
        %s510 = sld [smem:[#allocation2 + $0x3c]]
        %v511 = vstv %s510
        %v512 = vadd.f32 %v508, %v511
        %v513 = vadd.f32 %v509, %v511
        %s514 = sld [smem:[#allocation2 + $0x31]]
        %v515 = vstv %s514
        %v516 = vmul.f32 %v471, %v515
        %v517 = vmul.f32 %v473, %v515
        %s518 = sld [smem:[#allocation2 + $0x37]]
        %v519 = vstv %s518
        %v520 = vmul.f32 %v483, %v519
        %v521 = vmul.f32 %v485, %v519
        %v522 = vadd.f32 %v516, %v520
        %v523 = vadd.f32 %v517, %v521
        %s524 = sld [smem:[#allocation2 + $0x3d]]
        %v525 = vstv %s524
        %v526 = vadd.f32 %v522, %v525
        %v527 = vadd.f32 %v523, %v525
        %s528 = sld [smem:[#allocation2 + $0x32]]
        %v529 = vstv %s528
        %v530 = vmul.f32 %v471, %v529
        %v531 = vmul.f32 %v473, %v529
        %s532 = sld [smem:[#allocation2 + $0x38]]
        %v533 = vstv %s532
        %v534 = vmul.f32 %v483, %v533
        %v535 = vmul.f32 %v485, %v533
        %v536 = vadd.f32 %v530, %v534
        %v537 = vadd.f32 %v531, %v535
        %s538 = sld [smem:[#allocation2 + $0x3e]]
        %v539 = vstv %s538
        %v540 = vadd.f32 %v536, %v539
        %v541 = vadd.f32 %v537, %v539
        %s542 = sld [smem:[#allocation2 + $0x33]]
        %v543 = vstv %s542
        %v544 = vmul.f32 %v471, %v543
        %v545 = vmul.f32 %v473, %v543
        %s546 = sld [smem:[#allocation2 + $0x39]]
        %v547 = vstv %s546
        %v548 = vmul.f32 %v483, %v547
        %v549 = vmul.f32 %v485, %v547
        %v550 = vadd.f32 %v544, %v548
        %v551 = vadd.f32 %v545, %v549
        %s552 = sld [smem:[#allocation2 + $0x3f]]
        %v553 = vstv %s552
        %v554 = vadd.f32 %v550, %v553
        %v555 = vadd.f32 %v551, %v553
        %s556 = sld [smem:[#allocation2 + $0x34]]
        %v557 = vstv %s556
        %v558 = vmul.f32 %v471, %v557
        %v559 = vmul.f32 %v473, %v557
        %s560 = sld [smem:[#allocation2 + $0x3a]]
        %v561 = vstv %s560
        %v562 = vmul.f32 %v483, %v561
        %v563 = vmul.f32 %v485, %v561
        %v564 = vadd.f32 %v558, %v562
        %v565 = vadd.f32 %v559, %v563
        %s566 = sld [smem:[#allocation2 + $0x40]]
        %v567 = vstv %s566
        %v568 = vadd.f32 %v564, %v567
        %v569 = vadd.f32 %v565, %v567
        %s570 = sld [smem:[#allocation2 + $0x41]]
        %v571 = vstv %s570
        %v572 = vmul.f32 %v498, %v571
        %v573 = vmul.f32 %v499, %v571
        %s574 = sld [smem:[#allocation2 + $0x4a]]
        %v575 = vstv %s574
        %v576 = vmul.f32 %v512, %v575
        %v577 = vmul.f32 %v513, %v575
        %v578 = vadd.f32 %v572, %v576
        %v579 = vadd.f32 %v573, %v577
        %s580 = sld [smem:[#allocation2 + $0x53]]
        %v581 = vstv %s580
        %v582 = vmul.f32 %v526, %v581
        %v583 = vmul.f32 %v527, %v581
        %v584 = vadd.f32 %v578, %v582
        %v585 = vadd.f32 %v579, %v583
        %s586 = sld [smem:[#allocation2 + $0x5c]]
        %v587 = vstv %s586
        %v588 = vmul.f32 %v540, %v587
        %v589 = vmul.f32 %v541, %v587
        %v590 = vadd.f32 %v584, %v588
        %v591 = vadd.f32 %v585, %v589
        %s592 = sld [smem:[#allocation2 + $0x65]]
        %v593 = vstv %s592
        %v594 = vmul.f32 %v554, %v593
        %v595 = vmul.f32 %v555, %v593
        %v596 = vadd.f32 %v590, %v594
        %v597 = vadd.f32 %v591, %v595
        %s598 = sld [smem:[#allocation2 + $0x6e]]
        %v599 = vstv %s598
        %v600 = vmul.f32 %v568, %v599
        %v601 = vmul.f32 %v569, %v599
        %v602 = vadd.f32 %v596, %v600
        %v603 = vadd.f32 %v597, %v601
        %s604 = sld [smem:[#allocation2 + $0x77]]
        %v605 = vstv %s604
        %v606 = vadd.f32 %v602, %v605
        %v607 = vadd.f32 %v603, %v605
        %v608 = vmax.f32 %v606, 0.0
        %v609 = vmax.f32 %v607, 0.0
        %s610 = sld [smem:[#allocation2 + $0x42]]
        %v611 = vstv %s610
        %v612 = vmul.f32 %v498, %v611
        %v613 = vmul.f32 %v499, %v611
        %s614 = sld [smem:[#allocation2 + $0x4b]]
        %v615 = vstv %s614
        %v616 = vmul.f32 %v512, %v615
        %v617 = vmul.f32 %v513, %v615
        %v618 = vadd.f32 %v612, %v616
        %v619 = vadd.f32 %v613, %v617
        %s620 = sld [smem:[#allocation2 + $0x54]]
        %v621 = vstv %s620
        %v622 = vmul.f32 %v526, %v621
        %v623 = vmul.f32 %v527, %v621
        %v624 = vadd.f32 %v618, %v622
        %v625 = vadd.f32 %v619, %v623
        %s626 = sld [smem:[#allocation2 + $0x5d]]
        %v627 = vstv %s626
        %v628 = vmul.f32 %v540, %v627
        %v629 = vmul.f32 %v541, %v627
        %v630 = vadd.f32 %v624, %v628
        %v631 = vadd.f32 %v625, %v629
        %s632 = sld [smem:[#allocation2 + $0x66]]
        %v633 = vstv %s632
        %v634 = vmul.f32 %v554, %v633
        %v635 = vmul.f32 %v555, %v633
        %v636 = vadd.f32 %v630, %v634
        %v637 = vadd.f32 %v631, %v635
        %s638 = sld [smem:[#allocation2 + $0x6f]]
        %v639 = vstv %s638
        %v640 = vmul.f32 %v568, %v639
        %v641 = vmul.f32 %v569, %v639
        %v642 = vadd.f32 %v636, %v640
        %v643 = vadd.f32 %v637, %v641
        %s644 = sld [smem:[#allocation2 + $0x78]]
        %v645 = vstv %s644
        %v646 = vadd.f32 %v642, %v645
        %v647 = vadd.f32 %v643, %v645
        %v648 = vmax.f32 %v646, 0.0
        %v649 = vmax.f32 %v647, 0.0
        %s650 = sld [smem:[#allocation2 + $0x43]]
        %v651 = vstv %s650
        %v652 = vmul.f32 %v498, %v651
        %v653 = vmul.f32 %v499, %v651
        %s654 = sld [smem:[#allocation2 + $0x4c]]
        %v655 = vstv %s654
        %v656 = vmul.f32 %v512, %v655
        %v657 = vmul.f32 %v513, %v655
        %v658 = vadd.f32 %v652, %v656
        %v659 = vadd.f32 %v653, %v657
        %s660 = sld [smem:[#allocation2 + $0x55]]
        %v661 = vstv %s660
        %v662 = vmul.f32 %v526, %v661
        %v663 = vmul.f32 %v527, %v661
        %v664 = vadd.f32 %v658, %v662
        %v665 = vadd.f32 %v659, %v663
        %s666 = sld [smem:[#allocation2 + $0x5e]]
        %v667 = vstv %s666
        %v668 = vmul.f32 %v540, %v667
        %v669 = vmul.f32 %v541, %v667
        %v670 = vadd.f32 %v664, %v668
        %v671 = vadd.f32 %v665, %v669
        %s672 = sld [smem:[#allocation2 + $0x67]]
        %v673 = vstv %s672
        %v674 = vmul.f32 %v554, %v673
        %v675 = vmul.f32 %v555, %v673
        %v676 = vadd.f32 %v670, %v674
        %v677 = vadd.f32 %v671, %v675
        %s678 = sld [smem:[#allocation2 + $0x70]]
        %v679 = vstv %s678
        %v680 = vmul.f32 %v568, %v679
        %v681 = vmul.f32 %v569, %v679
        %v682 = vadd.f32 %v676, %v680
        %v683 = vadd.f32 %v677, %v681
        %s684 = sld [smem:[#allocation2 + $0x79]]
        %v685 = vstv %s684
        %v686 = vadd.f32 %v682, %v685
        %v687 = vadd.f32 %v683, %v685
        %v688 = vmax.f32 %v686, 0.0
        %v689 = vmax.f32 %v687, 0.0
        %s690 = sld [smem:[#allocation2 + $0x44]]
        %v691 = vstv %s690
        %v692 = vmul.f32 %v498, %v691
        %v693 = vmul.f32 %v499, %v691
        %s694 = sld [smem:[#allocation2 + $0x4d]]
        %v695 = vstv %s694
        %v696 = vmul.f32 %v512, %v695
        %v697 = vmul.f32 %v513, %v695
        %v698 = vadd.f32 %v692, %v696
        %v699 = vadd.f32 %v693, %v697
        %s700 = sld [smem:[#allocation2 + $0x56]]
        %v701 = vstv %s700
        %v702 = vmul.f32 %v526, %v701
        %v703 = vmul.f32 %v527, %v701
        %v704 = vadd.f32 %v698, %v702
        %v705 = vadd.f32 %v699, %v703
        %s706 = sld [smem:[#allocation2 + $0x5f]]
        %v707 = vstv %s706
        %v708 = vmul.f32 %v540, %v707
        %v709 = vmul.f32 %v541, %v707
        %v710 = vadd.f32 %v704, %v708
        %v711 = vadd.f32 %v705, %v709
        %s712 = sld [smem:[#allocation2 + $0x68]]
        %v713 = vstv %s712
        %v714 = vmul.f32 %v554, %v713
        %v715 = vmul.f32 %v555, %v713
        %v716 = vadd.f32 %v710, %v714
        %v717 = vadd.f32 %v711, %v715
        %s718 = sld [smem:[#allocation2 + $0x71]]
        %v719 = vstv %s718
        %v720 = vmul.f32 %v568, %v719
        %v721 = vmul.f32 %v569, %v719
        %v722 = vadd.f32 %v716, %v720
        %v723 = vadd.f32 %v717, %v721
        %s724 = sld [smem:[#allocation2 + $0x7a]]
        %v725 = vstv %s724
        %v726 = vadd.f32 %v722, %v725
        %v727 = vadd.f32 %v723, %v725
        %v728 = vmax.f32 %v726, 0.0
        %v729 = vmax.f32 %v727, 0.0
        %s730 = sld [smem:[#allocation2 + $0x45]]
        %v731 = vstv %s730
        %v732 = vmul.f32 %v498, %v731
        %v733 = vmul.f32 %v499, %v731
        %s734 = sld [smem:[#allocation2 + $0x4e]]
        %v735 = vstv %s734
        %v736 = vmul.f32 %v512, %v735
        %v737 = vmul.f32 %v513, %v735
        %v738 = vadd.f32 %v732, %v736
        %v739 = vadd.f32 %v733, %v737
        %s740 = sld [smem:[#allocation2 + $0x57]]
        %v741 = vstv %s740
        %v742 = vmul.f32 %v526, %v741
        %v743 = vmul.f32 %v527, %v741
        %v744 = vadd.f32 %v738, %v742
        %v745 = vadd.f32 %v739, %v743
        %s746 = sld [smem:[#allocation2 + $0x60]]
        %v747 = vstv %s746
        %v748 = vmul.f32 %v540, %v747
        %v749 = vmul.f32 %v541, %v747
        %v750 = vadd.f32 %v744, %v748
        %v751 = vadd.f32 %v745, %v749
        %s752 = sld [smem:[#allocation2 + $0x69]]
        %v753 = vstv %s752
        %v754 = vmul.f32 %v554, %v753
        %v755 = vmul.f32 %v555, %v753
        %v756 = vadd.f32 %v750, %v754
        %v757 = vadd.f32 %v751, %v755
        %s758 = sld [smem:[#allocation2 + $0x72]]
        %v759 = vstv %s758
        %v760 = vmul.f32 %v568, %v759
        %v761 = vmul.f32 %v569, %v759
        %v762 = vadd.f32 %v756, %v760
        %v763 = vadd.f32 %v757, %v761
        %s764 = sld [smem:[#allocation2 + $0x7b]]
        %v765 = vstv %s764
        %v766 = vadd.f32 %v762, %v765
        %v767 = vadd.f32 %v763, %v765
        %v768 = vmax.f32 %v766, 0.0
        %v769 = vmax.f32 %v767, 0.0
        %s770 = sld [smem:[#allocation2 + $0x46]]
        %v771 = vstv %s770
        %v772 = vmul.f32 %v498, %v771
        %v773 = vmul.f32 %v499, %v771
        %s774 = sld [smem:[#allocation2 + $0x4f]]
        %v775 = vstv %s774
        %v776 = vmul.f32 %v512, %v775
        %v777 = vmul.f32 %v513, %v775
        %v778 = vadd.f32 %v772, %v776
        %v779 = vadd.f32 %v773, %v777
        %s780 = sld [smem:[#allocation2 + $0x58]]
        %v781 = vstv %s780
        %v782 = vmul.f32 %v526, %v781
        %v783 = vmul.f32 %v527, %v781
        %v784 = vadd.f32 %v778, %v782
        %v785 = vadd.f32 %v779, %v783
        %s786 = sld [smem:[#allocation2 + $0x61]]
        %v787 = vstv %s786
        %v788 = vmul.f32 %v540, %v787
        %v789 = vmul.f32 %v541, %v787
        %v790 = vadd.f32 %v784, %v788
        %v791 = vadd.f32 %v785, %v789
        %s792 = sld [smem:[#allocation2 + $0x6a]]
        %v793 = vstv %s792
        %v794 = vmul.f32 %v554, %v793
        %v795 = vmul.f32 %v555, %v793
        %v796 = vadd.f32 %v790, %v794
        %v797 = vadd.f32 %v791, %v795
        %s798 = sld [smem:[#allocation2 + $0x73]]
        %v799 = vstv %s798
        %v800 = vmul.f32 %v568, %v799
        %v801 = vmul.f32 %v569, %v799
        %v802 = vadd.f32 %v796, %v800
        %v803 = vadd.f32 %v797, %v801
        %s804 = sld [smem:[#allocation2 + $0x7c]]
        %v805 = vstv %s804
        %v806 = vadd.f32 %v802, %v805
        %v807 = vadd.f32 %v803, %v805
        %v808 = vmax.f32 %v806, 0.0
        %v809 = vmax.f32 %v807, 0.0
        %s810 = sld [smem:[#allocation2 + $0x47]]
        %v811 = vstv %s810
        %v812 = vmul.f32 %v498, %v811
        %v813 = vmul.f32 %v499, %v811
        %s814 = sld [smem:[#allocation2 + $0x50]]
        %v815 = vstv %s814
        %v816 = vmul.f32 %v512, %v815
        %v817 = vmul.f32 %v513, %v815
        %v818 = vadd.f32 %v812, %v816
        %v819 = vadd.f32 %v813, %v817
        %s820 = sld [smem:[#allocation2 + $0x59]]
        %v821 = vstv %s820
        %v822 = vmul.f32 %v526, %v821
        %v823 = vmul.f32 %v527, %v821
        %v824 = vadd.f32 %v818, %v822
        %v825 = vadd.f32 %v819, %v823
        %s826 = sld [smem:[#allocation2 + $0x62]]
        %v827 = vstv %s826
        %v828 = vmul.f32 %v540, %v827
        %v829 = vmul.f32 %v541, %v827
        %v830 = vadd.f32 %v824, %v828
        %v831 = vadd.f32 %v825, %v829
        %s832 = sld [smem:[#allocation2 + $0x6b]]
        %v833 = vstv %s832
        %v834 = vmul.f32 %v554, %v833
        %v835 = vmul.f32 %v555, %v833
        %v836 = vadd.f32 %v830, %v834
        %v837 = vadd.f32 %v831, %v835
        %s838 = sld [smem:[#allocation2 + $0x74]]
        %v839 = vstv %s838
        %v840 = vmul.f32 %v568, %v839
        %v841 = vmul.f32 %v569, %v839
        %v842 = vadd.f32 %v836, %v840
        %v843 = vadd.f32 %v837, %v841
        %s844 = sld [smem:[#allocation2 + $0x7d]]
        %v845 = vstv %s844
        %v846 = vadd.f32 %v842, %v845
        %v847 = vadd.f32 %v843, %v845
        %v848 = vmax.f32 %v846, 0.0
        %v849 = vmax.f32 %v847, 0.0
        %s850 = sld [smem:[#allocation2 + $0x48]]
        %v851 = vstv %s850
        %v852 = vmul.f32 %v498, %v851
        %v853 = vmul.f32 %v499, %v851
        %s854 = sld [smem:[#allocation2 + $0x51]]
        %v855 = vstv %s854
        %v856 = vmul.f32 %v512, %v855
        %v857 = vmul.f32 %v513, %v855
        %v858 = vadd.f32 %v852, %v856
        %v859 = vadd.f32 %v853, %v857
        %s860 = sld [smem:[#allocation2 + $0x5a]]
        %v861 = vstv %s860
        %v862 = vmul.f32 %v526, %v861
        %v863 = vmul.f32 %v527, %v861
        %v864 = vadd.f32 %v858, %v862
        %v865 = vadd.f32 %v859, %v863
        %s866 = sld [smem:[#allocation2 + $0x63]]
        %v867 = vstv %s866
        %v868 = vmul.f32 %v540, %v867
        %v869 = vmul.f32 %v541, %v867
        %v870 = vadd.f32 %v864, %v868
        %v871 = vadd.f32 %v865, %v869
        %s872 = sld [smem:[#allocation2 + $0x6c]]
        %v873 = vstv %s872
        %v874 = vmul.f32 %v554, %v873
        %v875 = vmul.f32 %v555, %v873
        %v876 = vadd.f32 %v870, %v874
        %v877 = vadd.f32 %v871, %v875
        %s878 = sld [smem:[#allocation2 + $0x75]]
        %v879 = vstv %s878
        %v880 = vmul.f32 %v568, %v879
        %v881 = vmul.f32 %v569, %v879
        %v882 = vadd.f32 %v876, %v880
        %v883 = vadd.f32 %v877, %v881
        %s884 = sld [smem:[#allocation2 + $0x7e]]
        %v885 = vstv %s884
        %v886 = vadd.f32 %v882, %v885
        %v887 = vadd.f32 %v883, %v885
        %v888 = vmax.f32 %v886, 0.0
        %v889 = vmax.f32 %v887, 0.0
        %s890 = sld [smem:[#allocation2 + $0x49]]
        %v891 = vstv %s890
        %v892 = vmul.f32 %v498, %v891
        %v893 = vmul.f32 %v499, %v891
        %s894 = sld [smem:[#allocation2 + $0x52]]
        %v895 = vstv %s894
        %v896 = vmul.f32 %v512, %v895
        %v897 = vmul.f32 %v513, %v895
        %v898 = vadd.f32 %v892, %v896
        %v899 = vadd.f32 %v893, %v897
        %s900 = sld [smem:[#allocation2 + $0x5b]]
        %v901 = vstv %s900
        %v902 = vmul.f32 %v526, %v901
        %v903 = vmul.f32 %v527, %v901
        %v904 = vadd.f32 %v898, %v902
        %v905 = vadd.f32 %v899, %v903
        %s906 = sld [smem:[#allocation2 + $0x64]]
        %v907 = vstv %s906
        %v908 = vmul.f32 %v540, %v907
        %v909 = vmul.f32 %v541, %v907
        %v910 = vadd.f32 %v904, %v908
        %v911 = vadd.f32 %v905, %v909
        %s912 = sld [smem:[#allocation2 + $0x6d]]
        %v913 = vstv %s912
        %v914 = vmul.f32 %v554, %v913
        %v915 = vmul.f32 %v555, %v913
        %v916 = vadd.f32 %v910, %v914
        %v917 = vadd.f32 %v911, %v915
        %s918 = sld [smem:[#allocation2 + $0x76]]
        %v919 = vstv %s918
        %v920 = vmul.f32 %v568, %v919
        %v921 = vmul.f32 %v569, %v919
        %v922 = vadd.f32 %v916, %v920
        %v923 = vadd.f32 %v917, %v921
        %s924 = sld [smem:[#allocation2 + $0x7f]]
        %v925 = vstv %s924
        %v926 = vadd.f32 %v922, %v925
        %v927 = vadd.f32 %v923, %v925
        %v928 = vmax.f32 %v926, 0.0
        %v929 = vmax.f32 %v927, 0.0
        %s930 = sld [smem:[#allocation2 + $0x80]]
        %v931 = vstv %s930
        %v932 = vmul.f32 %v608, %v931
        %v933 = vmul.f32 %v609, %v931
        %s934 = sld [smem:[#allocation2 + $0x82]]
        %v935 = vstv %s934
        %v936 = vmul.f32 %v648, %v935
        %v937 = vmul.f32 %v649, %v935
        %v938 = vadd.f32 %v932, %v936
        %v939 = vadd.f32 %v933, %v937
        %s940 = sld [smem:[#allocation2 + $0x84]]
        %v941 = vstv %s940
        %v942 = vmul.f32 %v688, %v941
        %v943 = vmul.f32 %v689, %v941
        %v944 = vadd.f32 %v938, %v942
        %v945 = vadd.f32 %v939, %v943
        %s946 = sld [smem:[#allocation2 + $0x86]]
        %v947 = vstv %s946
        %v948 = vmul.f32 %v728, %v947
        %v949 = vmul.f32 %v729, %v947
        %v950 = vadd.f32 %v944, %v948
        %v951 = vadd.f32 %v945, %v949
        %s952 = sld [smem:[#allocation2 + $0x88]]
        %v953 = vstv %s952
        %v954 = vmul.f32 %v768, %v953
        %v955 = vmul.f32 %v769, %v953
        %v956 = vadd.f32 %v950, %v954
        %v957 = vadd.f32 %v951, %v955
        %s958 = sld [smem:[#allocation2 + $0x8a]]
        %v959 = vstv %s958
        %v960 = vmul.f32 %v808, %v959
        %v961 = vmul.f32 %v809, %v959
        %v962 = vadd.f32 %v956, %v960
        %v963 = vadd.f32 %v957, %v961
        %s964 = sld [smem:[#allocation2 + $0x8c]]
        %v965 = vstv %s964
        %v966 = vmul.f32 %v848, %v965
        %v967 = vmul.f32 %v849, %v965
        %v968 = vadd.f32 %v962, %v966
        %v969 = vadd.f32 %v963, %v967
        %s970 = sld [smem:[#allocation2 + $0x8e]]
        %v971 = vstv %s970
        %v972 = vmul.f32 %v888, %v971
        %v973 = vmul.f32 %v889, %v971
        %v974 = vadd.f32 %v968, %v972
        %v975 = vadd.f32 %v969, %v973
        %s976 = sld [smem:[#allocation2 + $0x90]]
        %v977 = vstv %s976
        %v978 = vmul.f32 %v928, %v977
        %v979 = vmul.f32 %v929, %v977
        %v980 = vadd.f32 %v974, %v978
        %v981 = vadd.f32 %v975, %v979
        %s982 = sld [smem:[#allocation2 + $0x92]]
        %v983 = vstv %s982
        %v984 = vadd.f32 %v980, %v983
        %v985 = vadd.f32 %v981, %v983
        %s986 = sld [smem:[#allocation2 + $0x81]]
        %v987 = vstv %s986
        %v988 = vmul.f32 %v608, %v987
        %v989 = vmul.f32 %v609, %v987
        %s990 = sld [smem:[#allocation2 + $0x83]]
        %v991 = vstv %s990
        %v992 = vmul.f32 %v648, %v991
        %v993 = vmul.f32 %v649, %v991
        %v994 = vadd.f32 %v988, %v992
        %v995 = vadd.f32 %v989, %v993
        %s996 = sld [smem:[#allocation2 + $0x85]]
        %v997 = vstv %s996
        %v998 = vmul.f32 %v688, %v997
        %v999 = vmul.f32 %v689, %v997
        %v1000 = vadd.f32 %v994, %v998
        %v1001 = vadd.f32 %v995, %v999
        %s1002 = sld [smem:[#allocation2 + $0x87]]
        %v1003 = vstv %s1002
        %v1004 = vmul.f32 %v728, %v1003
        %v1005 = vmul.f32 %v729, %v1003
        %v1006 = vadd.f32 %v1000, %v1004
        %v1007 = vadd.f32 %v1001, %v1005
        %s1008 = sld [smem:[#allocation2 + $0x89]]
        %v1009 = vstv %s1008
        %v1010 = vmul.f32 %v768, %v1009
        %v1011 = vmul.f32 %v769, %v1009
        %v1012 = vadd.f32 %v1006, %v1010
        %v1013 = vadd.f32 %v1007, %v1011
        %s1014 = sld [smem:[#allocation2 + $0x8b]]
        %v1015 = vstv %s1014
        %v1016 = vmul.f32 %v808, %v1015
        %v1017 = vmul.f32 %v809, %v1015
        %v1018 = vadd.f32 %v1012, %v1016
        %v1019 = vadd.f32 %v1013, %v1017
        %s1020 = sld [smem:[#allocation2 + $0x8d]]
        %v1021 = vstv %s1020
        %v1022 = vmul.f32 %v848, %v1021
        %v1023 = vmul.f32 %v849, %v1021
        %v1024 = vadd.f32 %v1018, %v1022
        %v1025 = vadd.f32 %v1019, %v1023
        %s1026 = sld [smem:[#allocation2 + $0x8f]]
        %v1027 = vstv %s1026
        %v1028 = vmul.f32 %v888, %v1027
        %v1029 = vmul.f32 %v889, %v1027
        %v1030 = vadd.f32 %v1024, %v1028
        %v1031 = vadd.f32 %v1025, %v1029
        %s1032 = sld [smem:[#allocation2 + $0x91]]
        %v1033 = vstv %s1032
        %v1034 = vmul.f32 %v928, %v1033
        %v1035 = vmul.f32 %v929, %v1033
        %v1036 = vadd.f32 %v1030, %v1034
        %v1037 = vadd.f32 %v1031, %v1035
        %s1038 = sld [smem:[#allocation2 + $0x93]]
        %v1039 = vstv %s1038
        %v1040 = vadd.f32 %v1036, %v1039
        %v1041 = vadd.f32 %v1037, %v1039
        %v1042 = vsub.f32 %v1040, %v984
        %v1043 = vsub.f32 %v1041, %v985
        %v1044 = vmul.f32 %v1042, 1.442695
        %v1045 = vpow.pop %v1044
        %v1046 = vmul.f32 %v1043, 1.442695
        %v1047 = vpow.pop %v1046
        %v1048 = vadd.f32 %v1045, 1.0
        %v1049 = vadd.f32 %v1047, 1.0
        %v1050 = vrcp.pop %v1048
        %v1051 = vmul.f32 1.0, %v1050
        %v1052 = vrcp.pop %v1049
        %v1053 = vmul.f32 1.0, %v1052
        %v1054 = vsub.f32 %v984, %v1040
        %v1055 = vsub.f32 %v985, %v1041
        %v1056 = vmul.f32 %v1054, 1.442695
        %v1057 = vpow.pop %v1056
        %v1058 = vmul.f32 %v1055, 1.442695
        %v1059 = vpow.pop %v1058
        %v1060 = vadd.f32 %v1057, 1.0
        %v1061 = vadd.f32 %v1059, 1.0
        %v1062 = vrcp.pop %v1060
        %v1063 = vmul.f32 1.0, %v1062
        %v1064 = vrcp.pop %v1061
        %v1065 = vmul.f32 1.0, %v1064
        %1066 = vst [vmem:[%s198] sm:$0xff] %v1051
        %1067 = vst [vmem:[%s198 + $0x8] sm:$0xff] %v1053
        %s1068 = scalar_lea.vmem %s198, 16 [#allocation5]
        %1069 = vst [vmem:[%s1068] sm:$0xff] %v1063
        %1070 = vst [vmem:[%s1068 + $0x8] sm:$0xff] %v1065
        %s1071 = scalar_lea.vmem %s198, 32 [#allocation5]
        %1072 = vst [vmem:[%s1071] sm:$0xff] %v471
        %1073 = vst [vmem:[%s1071 + $0x8] sm:$0xff] %v473
        %s1074 = scalar_lea.vmem %s198, 48 [#allocation5]
        %1075 = vst [vmem:[%s1074] sm:$0xff] %v483
        %1076 = vst [vmem:[%s1074 + $0x8] sm:$0xff] %v485
        %s1077 = sand.u32 %s69, 1
        %s1078 = sand.u32 %s69, 1
        %s1079 = smul.addr %s1078, 64
        %s1080 = scalar_lea.vmem [#allocation5], %s1079
        // Predicated region
        $region71: #{autoencoder_extend_forward.1} parent=61 // pred_check
          %p1081 = pneg %p79
        $region72: #{autoencoder_extend_forward.1} parent=61 // pred_check_branch
          %1083 = sbr.rel (%p1081) target = $region74
        $region73: #{autoencoder_extend_forward.1} parent=61 // pred_region
          %s1084 = smul.u32 2, %s14
          %s1085 = smul.addr %s1084, 8
          %s1086 = scalar_lea.vmem %s2, %s1085
          // Predicated region
          $region75: #{autoencoder_extend_forward.1} parent=73 // pred_check
            _
          $region76: #{autoencoder_extend_forward.1} parent=73 // pred_check_branch
            %1088 = sbr.rel (0) target = $region78
          $region77: #{autoencoder_extend_forward.1} parent=73 // pred_region
            // Predicated region
            $region79: #{autoencoder_extend_forward.1} parent=77 // pred_check
              _
            $region80: #{autoencoder_extend_forward.1} parent=77 // pred_check_branch
              %1090 = sbr.rel (0) target = $region82
            $region81: #{autoencoder_extend_forward.1} parent=77 // pred_region
              // Predicated region
              $region94: #{autoencoder_extend_forward.1} parent=81 // pred_check
                _
              $region95: #{autoencoder_extend_forward.1} parent=81 // pred_check_branch
                %1119 = sbr.rel (0) target = $region97
              $region96: #{autoencoder_extend_forward.1} parent=81 // pred_region
                loop: start=0, step=1, limit=1
                $region98: #{autoencoder_extend_forward.1} parent=96 // loop_pre_header
                  _
                $region99: #{autoencoder_extend_forward.1} parent=96 // loop_header
                  %s1121 = sphi 0, %s1125
                  %p1122 = scmp.ge.s32.totalorder %s1121, 1
                  %s1126 = sphi %s1080, %s1080
                  %s1127 = sphi %s1086, %s1086
                $region100: #{autoencoder_extend_forward.1} parent=96 // loop_header_branch
                  %1124 = sbr.rel (%p1122) target = $region104
                $region101: #{autoencoder_extend_forward.1} parent=96 // loop_body
                  %v1128 = vld [vmem:[%s1126] sm:$0xff]
                  %1129 = vst [vmem:[%s1127] sm:$0xff] %v1128
                  %v1130 = vld [vmem:[%s1126 + $0x8] sm:$0xff]
                  %1131 = vst [vmem:[%s1127 + $0x8] sm:$0xff] %v1130
                  %v1132 = vld [vmem:[%s1126 + $0x10] sm:$0xff]
                  %1133 = vst [vmem:[%s1127 + $0x20] sm:$0xff] %v1132
                  %v1134 = vld [vmem:[%s1126 + $0x18] sm:$0xff]
                  %1135 = vst [vmem:[%s1127 + $0x28] sm:$0xff] %v1134
                  %v1136 = vld [vmem:[%s1126 + $0x20] sm:$0xff]
                  %1137 = vst [vmem:[%s1127 + $0x40] sm:$0xff] %v1136
                  %v1138 = vld [vmem:[%s1126 + $0x28] sm:$0xff]
                  %1139 = vst [vmem:[%s1127 + $0x48] sm:$0xff] %v1138
                  %v1140 = vld [vmem:[%s1126 + $0x30] sm:$0xff]
                  %1141 = vst [vmem:[%s1127 + $0x60] sm:$0xff] %v1140
                  %v1142 = vld [vmem:[%s1126 + $0x38] sm:$0xff]
                  %1143 = vst [vmem:[%s1127 + $0x68] sm:$0xff] %v1142
                $region102: #{autoencoder_extend_forward.1} parent=96 // loop_footer
                  %s1125 = sadd.s32 1, %s1121
                $region103: #{autoencoder_extend_forward.1} parent=96 // loop_footer_branch
                  %1120 = sbr.rel target = $region99
                $region104: #{autoencoder_extend_forward.1} parent=96 // loop_exit
                  _
              $region97: #{autoencoder_extend_forward.1} parent=81 // pred_fallthru
                _
              // Predicated region
              $region105: #{autoencoder_extend_forward.1} parent=81 // pred_check
                _
              $region106: #{autoencoder_extend_forward.1} parent=81 // pred_check_branch
                %1145 = sbr.rel target = $region108
              $region107: #{autoencoder_extend_forward.1} parent=81 // pred_region
                _
              $region108: #{autoencoder_extend_forward.1} parent=81 // pred_fallthru
                _
            $region82: #{autoencoder_extend_forward.1} parent=77 // pred_fallthru
              _
            // Predicated region
            $region83: #{autoencoder_extend_forward.1} parent=77 // pred_check
              _
            $region84: #{autoencoder_extend_forward.1} parent=77 // pred_check_branch
              %1092 = sbr.rel target = $region86
            $region85: #{autoencoder_extend_forward.1} parent=77 // pred_region
              loop: start=0, step=1, limit=1
              $region87: #{autoencoder_extend_forward.1} parent=85 // loop_pre_header
                _
              $region88: #{autoencoder_extend_forward.1} parent=85 // loop_header
                %s1095 = sphi 0, %s1099
                %p1096 = scmp.ge.s32.totalorder %s1095, 1
                %s1100 = sphi %s1080, %s1080
                %s1101 = sphi %s1086, %s1086
              $region89: #{autoencoder_extend_forward.1} parent=85 // loop_header_branch
                %1098 = sbr.rel (%p1096) target = $region93
              $region90: #{autoencoder_extend_forward.1} parent=85 // loop_body
                %v1102 = vld [vmem:[%s1100] sm:$0xff]
                %1103 = vst [vmem:[%s1101] sm:$0xff] %v1102
                %v1104 = vld [vmem:[%s1100 + $0x8] sm:$0xff]
                %1105 = vst [vmem:[%s1101 + $0x8] sm:$0xff] %v1104
                %v1106 = vld [vmem:[%s1100 + $0x10] sm:$0xff]
                %1107 = vst [vmem:[%s1101 + $0x20] sm:$0xff] %v1106
                %v1108 = vld [vmem:[%s1100 + $0x18] sm:$0xff]
                %1109 = vst [vmem:[%s1101 + $0x28] sm:$0xff] %v1108
                %v1110 = vld [vmem:[%s1100 + $0x20] sm:$0xff]
                %1111 = vst [vmem:[%s1101 + $0x40] sm:$0xff] %v1110
                %v1112 = vld [vmem:[%s1100 + $0x28] sm:$0xff]
                %1113 = vst [vmem:[%s1101 + $0x48] sm:$0xff] %v1112
                %v1114 = vld [vmem:[%s1100 + $0x30] sm:$0xff]
                %1115 = vst [vmem:[%s1101 + $0x60] sm:$0xff] %v1114
                %v1116 = vld [vmem:[%s1100 + $0x38] sm:$0xff]
                %1117 = vst [vmem:[%s1101 + $0x68] sm:$0xff] %v1116
              $region91: #{autoencoder_extend_forward.1} parent=85 // loop_footer
                %s1099 = sadd.s32 1, %s1095
              $region92: #{autoencoder_extend_forward.1} parent=85 // loop_footer_branch
                %1094 = sbr.rel target = $region88
              $region93: #{autoencoder_extend_forward.1} parent=85 // loop_exit
                _
            $region86: #{autoencoder_extend_forward.1} parent=77 // pred_fallthru
              _
          $region78: #{autoencoder_extend_forward.1} parent=73 // pred_fallthru
            _
          %1146 = vnop
        $region74: #{autoencoder_extend_forward.1} parent=61 // pred_fallthru
          _
      $region62: #{autoencoder_extend_forward.1} parent=5 // pred_fallthru
        _
      %p1147 = scmp.le.s32.totalorder 2, %s9
      // Predicated region
      $region109: #{autoencoder_extend_forward.1} parent=5 // pred_check
        %p1148 = pneg %p1147
      $region110: #{autoencoder_extend_forward.1} parent=5 // pred_check_branch
        %1150 = sbr.rel (%p1148) target = $region112
      $region111: #{autoencoder_extend_forward.1} parent=5 // pred_region
        %s1151 = ssub.s32 %s9, 2
        // Predicated region
        $region113: #{autoencoder_extend_forward.1} parent=111 // pred_check
          %p1152 = pneg %p85
        $region114: #{autoencoder_extend_forward.1} parent=111 // pred_check_branch
          %1154 = sbr.rel (%p1152) target = $region116
        $region115: #{autoencoder_extend_forward.1} parent=111 // pred_region
          %s1155 = sand.u32 %s70, 1
          %s1156 = sand.u32 %s70, 1
          %s1157 = smul.addr %s1156, 64
          %s1158 = scalar_lea.vmem [#allocation5], %s1157
        $region116: #{autoencoder_extend_forward.1} parent=111 // pred_fallthru
          _
      $region112: #{autoencoder_extend_forward.1} parent=5 // pred_fallthru
        _
    $region6: #{autoencoder_extend_forward.1} parent=1 // loop_footer
      %s13 = sadd.s32 1, %s9
    $region7: #{autoencoder_extend_forward.1} parent=1 // loop_footer_branch
      %8 = sbr.rel target = $region3
    $region8: #{autoencoder_extend_forward.1} parent=1 // loop_exit
      _
    %1159 = vsyncpa [#allocation3], 1
    %s1160 = scalar_lea.sflag [#allocation3], 1
    %1161 = vsyncpa %s1160, 1

</llo_original>
